<compile_context>
chip_gen: v7x
topology: tpu7x:2x2x1
jax: 0.10.0
libtpu: 0.0.40
codegen_flags: <defaults>
</compile_context>

<pallas_src>
import functools

import jax
import jax.numpy as jnp
from jax import lax
from jax.experimental import pallas as pl
from jax.experimental.pallas import tpu as pltpu


# ----------------------------- fused Pallas kernel ---------------------------

def _fused_cnn_kernel(x_ref, m1_ref, w1_ref, b1_ref, sel_ref, m2_ref, w2_ref,
                      b2_ref, w3_ref, b3_ref, w4_ref, b4_ref, o_ref,
                      st1_ref, st2_ref, fcin_ref, *, H, W, C1, slope):
    HW = H * W
    H2, W2 = H // 2, W // 2
    P = H2 * W2
    C0p = x_ref.shape[1]          # channel dim padded to a multiple of 8

    bf16 = jnp.bfloat16

    # ---- conv1 (+folded BN2d) : stack 9 shifted taps, ONE MXU matmul --------
    x = x_ref[0]                                              # (C0p, HW) f32
    for t in range(9):
        dh, dw = t // 3 - 1, t % 3 - 1
        off = dh * W + dw
        xs = x if off == 0 else pltpu.roll(x, shift=(-off) % HW, axis=1)
        if dh == 0 and dw == 0:
            st1_ref[t * C0p:(t + 1) * C0p, :] = xs
        else:
            st1_ref[t * C0p:(t + 1) * C0p, :] = xs * m1_ref[t:t + 1, :]
    y1 = jnp.dot(w1_ref[...], st1_ref[...].astype(bf16),
                 preferred_element_type=jnp.float32) + b1_ref[...]
    y1 = jnp.maximum(y1, 0.0)                                 # (C1, HW)

    # ---- 2x2 stride-2 max-pool: neighbour max + host 0/1 compaction matmul --
    tmax = jnp.maximum(y1, pltpu.roll(y1, shift=HW - 1, axis=1))
    tmax = jnp.maximum(tmax, pltpu.roll(tmax, shift=HW - W, axis=1))
    pooled = jnp.dot(tmax.astype(bf16), sel_ref[...],
                     preferred_element_type=jnp.float32)      # (C1, P)

    # ---- conv2: tap-stacked single matmul + LeakyReLU -----------------------
    for t in range(9):
        dh, dw = t // 3 - 1, t % 3 - 1
        off = dh * W2 + dw
        ps = pooled if off == 0 else pltpu.roll(pooled, shift=(-off) % P, axis=1)
        if dh == 0 and dw == 0:
            st2_ref[t * C1:(t + 1) * C1, :] = ps
        else:
            st2_ref[t * C1:(t + 1) * C1, :] = ps * m2_ref[t:t + 1, :]
    y2 = jnp.dot(w2_ref[...], st2_ref[...].astype(bf16),
                 preferred_element_type=jnp.float32) + b2_ref[...]
    y2 = jnp.where(y2 >= 0.0, y2, slope * y2)                 # (C1, P)

    # ---- flatten (PyTorch NCHW order) into one lane-dense row ---------------
    for c in range(C1):
        fcin_ref[:, c * P:(c + 1) * P] = y2[c:c + 1, :]
    flat = fcin_ref[...].astype(bf16)                         # (1, C1*P)

    # ---- fc1 (+folded BN1d) + ReLU + dropout(eval=identity) + fc2 -----------
    # TODO(synk): train-mode stochastic dropout not implemented (eval identity).
    h3 = jnp.dot(flat, w3_ref[...],
                 preferred_element_type=jnp.float32) + b3_ref[...]
    h3 = jnp.maximum(h3, 0.0)                                 # (1, F1)
    out = jnp.dot(h3.astype(bf16), w4_ref[...],
                  preferred_element_type=jnp.float32) + b4_ref[...]   # (1, F2p)
    o_ref[0] = out                                            # single lane-dense store


def fused_cnn_forward(prepared, x_nchw, slope=0.1):
    """One pallas_call for the entire forward pass, batch-parallel grid."""
    N, C0, H, W = x_nchw.shape
    HW = H * W
    H2, W2 = H // 2, W // 2
    P = H2 * W2
    C0p = prepared["C0p"]
    C1 = prepared["b1"].shape[0]
    F2p = prepared["w4p"].shape[1]
    F2 = prepared["F2"]

    # NCHW -> (N, C0p, H*W), input channels zero-padded to a multiple of 8.
    x3 = x_nchw.reshape(N, C0, HW)
    if C0p > C0:
        x3 = jnp.concatenate(
            [x3, jnp.zeros((N, C0p - C0, HW), x3.dtype)], axis=1)

    consts = (prepared["m1"], prepared["w1s"], prepared["b1"],
              prepared["sel"], prepared["m2"], prepared["w2s"], prepared["b2"],
              prepared["w3f"], prepared["b3"], prepared["w4p"], prepared["b4p"])

    kernel = functools.partial(_fused_cnn_kernel, H=H, W=W, C1=C1, slope=slope)

    out = pl.pallas_call(
        kernel,
        out_shape=jax.ShapeDtypeStruct((N, 1, F2p), jnp.float32),
        grid=(N,),
        in_specs=[pl.BlockSpec((1, C0p, HW), lambda n: (n, 0, 0))]
                 + [pl.BlockSpec(c.shape, lambda n: (0, 0)) for c in consts],
        out_specs=pl.BlockSpec((1, 1, F2p), lambda n: (n, 0, 0)),
        scratch_shapes=[pltpu.VMEM((9 * C0p, HW), jnp.float32),   # conv1 tap stack
                        pltpu.VMEM((9 * C1, P), jnp.float32),     # conv2 tap stack
                        pltpu.VMEM((1, C1 * P), jnp.float32)],    # fc1 flatten row
        compiler_params=pltpu.CompilerParams(
            dimension_semantics=("parallel",),
            vmem_limit_bytes=32 * 1024 * 1024,
        ),
    )(x3, *consts)
    return out[:, 0, :F2]


# ------------------------- parameters & preparation --------------------------

def init_params(architecture, key):
    """Deterministic init mimicking PyTorch defaults (not a checkpoint load)."""
    params = []
    for l in architecture:
        t = l["type"]
        if t == "conv":
            key, k1, k2 = jax.random.split(key, 3)
            k = l["kernel_size"]
            fan_in = l["in_channels"] * k * k
            bound = fan_in ** -0.5
            w = jax.random.uniform(k1, (l["out_channels"], l["in_channels"], k, k),
                                   jnp.float32, -bound, bound)
            b = jax.random.uniform(k2, (l["out_channels"],), jnp.float32, -bound, bound)
            params.append({"w": w, "b": b})
        elif t == "fc":
            key, k1, k2 = jax.random.split(key, 3)
            fan_in = l["in_features"]
            bound = fan_in ** -0.5
            w = jax.random.uniform(k1, (l["out_features"], l["in_features"]),
                                   jnp.float32, -bound, bound)
            b = jax.random.uniform(k2, (l["out_features"],), jnp.float32, -bound, bound)
            params.append({"w": w, "b": b})
        elif t in ("batch_norm", "batch_norm_1d"):
            n = l["nr_features"]
            params.append({"gamma": jnp.ones((n,), jnp.float32),
                           "beta": jnp.zeros((n,), jnp.float32),
                           "mean": jnp.zeros((n,), jnp.float32),
                           "var": jnp.ones((n,), jnp.float32),
                           "eps": 1e-5})
        else:
            params.append(None)
    return params


def prepare_fused_params(params, architecture, H, W):
    """One-time host-side prep: BN folding, tap-stacked conv weights, boundary
    masks, pool selector, fc weight layouts, bf16 casts, fc2 lane padding."""
    types = [l["type"] for l in architecture]
    i_c1 = types.index("conv")
    i_bn = types.index("batch_norm")
    i_c2 = types.index("conv", i_c1 + 1)
    i_f1 = types.index("fc")
    i_bn1d = types.index("batch_norm_1d")
    i_f2 = types.index("fc", i_f1 + 1)

    c1, bn1, c2 = params[i_c1], params[i_bn], params[i_c2]
    fc1, bn1d, fc2 = params[i_f1], params[i_bn1d], params[i_f2]

    C1, C0 = c1["w"].shape[0], c1["w"].shape[1]
    C0p = ((max(C0, 1) + 7) // 8) * 8
    H2, W2 = H // 2, W // 2
    HW, P = H * W, H2 * W2

    # Fold eval-mode BN2d into conv1; build tap-stacked weight (C1, 9*C0p).
    s1 = bn1["gamma"] / jnp.sqrt(bn1["var"] + bn1["eps"])
    t1 = bn1["beta"] - bn1["mean"] * s1
    w1f = c1["w"] * s1[:, None, None, None]                     # (C1, C0, 3, 3)
    w1s = jnp.transpose(w1f, (0, 2, 3, 1)).reshape(C1, 9, C0)   # [o, t, ci]
    w1s = jnp.pad(w1s, ((0, 0), (0, 0), (0, C0p - C0))).reshape(C1, 9 * C0p)
    b1 = (c1["b"] * s1 + t1).reshape(C1, 1)

    # conv2 tap-stacked weight (C1, 9*C1).
    w2s = jnp.transpose(c2["w"], (0, 2, 3, 1)).reshape(C1, 9 * C1)
    b2 = c2["b"].reshape(C1, 1)

    # Host tap-validity masks (1.0 where the shifted position is inside image).
    def tap_masks(h, w):
        hh = jnp.arange(h * w) // w
        ww = jnp.arange(h * w) % w
        ms = []
        for t in range(9):
            dh, dw = t // 3 - 1, t % 3 - 1
            ms.append((hh + dh >= 0) & (hh + dh < h) &
                      (ww + dw >= 0) & (ww + dw < w))
        return jnp.stack(ms).astype(jnp.float32)
    m1 = tap_masks(H, W)                                        # (9, HW)
    m2 = tap_masks(H2, W2)                                      # (9, P)

    # Host per-sample 2x2/2 max-pool compaction selector (HW, P), 0/1.
    p_idx = jnp.arange(P)
    src = (p_idx // W2) * (2 * W) + (p_idx % W2) * 2
    sel = (jnp.arange(HW)[:, None] == src[None, :]).astype(jnp.float32)

    # Fold eval-mode BN1d into fc1; flatten order matches PyTorch NCHW (c, h, w).
    s3 = bn1d["gamma"] / jnp.sqrt(bn1d["var"] + bn1d["eps"])
    t3 = bn1d["beta"] - bn1d["mean"] * s3
    w3f = (fc1["w"] * s3[:, None]).T                            # (C1*P, F1)
    b3 = (fc1["b"] * s3 + t3).reshape(1, -1)

    # fc2, padded to a lane-dense (F1, F2pad) with F2pad a multiple of 128.
    F2 = fc2["w"].shape[0]
    F2p = ((F2 + 127) // 128) * 128
    w4p = jnp.pad(fc2["w"].T, ((0, 0), (0, F2p - F2)))          # (F1, F2p)
    b4p = jnp.pad(fc2["b"], (0, F2p - F2)).reshape(1, F2p)

    bf = jnp.bfloat16
    return dict(
        m1=m1, w1s=w1s.astype(bf), b1=b1,
        sel=sel.astype(bf), m2=m2, w2s=w2s.astype(bf), b2=b2,
        w3f=w3f.astype(bf), b3=b3, w4p=w4p.astype(bf), b4p=b4p,
        C0p=C0p, F2=F2)


# -------------------------- pure-JAX reference (eval) ------------------------

def reference_forward(params, architecture, x):
    h = x
    for l, p in zip(architecture, params):
        t = l["type"]
        if t == "conv":
            h = lax.conv_general_dilated(
                h, p["w"],
                window_strides=(l["stride"], l["stride"]),
                padding=((l["padding"], l["padding"]),
                         (l["padding"], l["padding"])),
                dimension_numbers=("NCHW", "OIHW", "NCHW"))
            h = h + p["b"][None, :, None, None]
        elif t == "pool":
            k, s = l["kernel_size"], l["stride"]
            h = lax.reduce_window(h, -jnp.inf, lax.max,
                                  (1, 1, k, k), (1, 1, s, s), "VALID")
        elif t == "batch_norm":
            sc = p["gamma"] / jnp.sqrt(p["var"] + p["eps"])
            h = h * sc[None, :, None, None] + \
                (p["beta"] - p["mean"] * sc)[None, :, None, None]
        elif t == "batch_norm_1d":
            sc = p["gamma"] / jnp.sqrt(p["var"] + p["eps"])
            h = h * sc[None, :] + (p["beta"] - p["mean"] * sc)[None, :]
        elif t == "relu":
            h = jnp.maximum(h, 0.0)
        elif t == "leaky_relu":
            h = jnp.where(h >= 0, h, l["slope"] * h)
        elif t == "flatten":
            h = h.reshape(h.shape[0], -1)
        elif t == "fc":
            h = h @ p["w"].T + p["b"]
        elif t == "dropout":
            pass  # eval-mode identity
        else:
            raise ValueError(f"Unsupported layer type: {t}")
    return h


# --------------------------------- main ---------------------------------------

if __name__ == "__main__":
    architecture = [
        {"type": "conv", "in_channels": 4, "out_channels": 8, "kernel_size": 3,
         "stride": 1, "padding": 1},
        {"type": "batch_norm", "nr_features": 8, "momentum": 0.1},
        {"type": "relu"},
        {"type": "pool", "kernel_size": 2, "stride": 2, "padding": 0},
        {"type": "conv", "in_channels": 8, "out_channels": 8, "kernel_size": 3,
         "stride": 1, "padding": 1, "skip_connection": True},
        {"type": "leaky_relu", "slope": 0.1},
        {"type": "flatten"},
        {"type": "fc", "in_features": 8 * 8 * 8, "out_features": 32},
        {"type": "batch_norm_1d", "nr_features": 32, "momentum": 0.1},
        {"type": "relu"},
        {"type": "dropout", "p": 0.5},
        {"type": "fc", "in_features": 32, "out_features": 10},
    ]

    N, C0, H, W = 2, 4, 16, 16
    params = init_params(architecture, jax.random.PRNGKey(42))
    prepared = prepare_fused_params(params, architecture, H, W)
    slope = next(l["slope"] for l in architecture if l["type"] == "leaky_relu")

    x = jax.random.normal(jax.random.PRNGKey(0), (N, C0, H, W), jnp.float32)

    fwd = jax.jit(functools.partial(fused_cnn_forward, prepared, slope=slope))
    out = jax.block_until_ready(fwd(x))
    assert out.shape == (N, 10) and out.dtype == jnp.float32

    # Sanity check against a pure-JAX/XLA reference of the same module (eval mode).
    with jax.default_matmul_precision("highest"):
        ref = jax.jit(lambda inp: reference_forward(params, architecture, inp))(x)
    ref = jax.block_until_ready(ref)
    max_err = float(jnp.max(jnp.abs(out - ref)))
    assert jnp.allclose(out, ref, atol=3e-2, rtol=3e-2), f"max abs diff {max_err}"

    print("KERNEL_OK")
</pallas_src>

<mosaic_0001>
module attributes {stable_mosaic.version = 11 : i64} {
  func.func @_fused_cnn_kernel(%arg0: i32, %arg1: memref<1x8x256xf32, #tpu.memory_space<vmem>>, %arg2: memref<9x256xf32, #tpu.memory_space<vmem>>, %arg3: memref<8x72xbf16, #tpu.memory_space<vmem>>, %arg4: memref<8x1xf32, #tpu.memory_space<vmem>>, %arg5: memref<256x64xbf16, #tpu.memory_space<vmem>>, %arg6: memref<9x64xf32, #tpu.memory_space<vmem>>, %arg7: memref<8x72xbf16, #tpu.memory_space<vmem>>, %arg8: memref<8x1xf32, #tpu.memory_space<vmem>>, %arg9: memref<512x32xbf16, #tpu.memory_space<vmem>>, %arg10: memref<1x32xf32, #tpu.memory_space<vmem>>, %arg11: memref<32x128xbf16, #tpu.memory_space<vmem>>, %arg12: memref<1x128xf32, #tpu.memory_space<vmem>>, %arg13: memref<1x1x128xf32, #tpu.memory_space<vmem>>, %arg14: memref<72x256xf32, #tpu.memory_space<vmem>>, %arg15: memref<72x64xf32, #tpu.memory_space<vmem>>, %arg16: memref<1x512xf32, #tpu.memory_space<vmem>>) attributes {dimension_semantics = [#tpu.dimension_semantics<parallel>], iteration_bounds = array<i64: 2>, scalar_prefetch = 0 : i64, scratch_operands = 3 : i64, tpu.core_type = #tpu.core_type<tc>, window_params = [{transform_indices = @transform_0, window_bounds = array<i64: 1, 8, 256>}, {pipeline_mode = #tpu.pipeline_mode<synchronous>, transform_indices = @transform_1, window_bounds = array<i64: 9, 256>}, {pipeline_mode = #tpu.pipeline_mode<synchronous>, transform_indices = @transform_2, window_bounds = array<i64: 8, 72>}, {pipeline_mode = #tpu.pipeline_mode<synchronous>, transform_indices = @transform_3, window_bounds = array<i64: 8, 1>}, {pipeline_mode = #tpu.pipeline_mode<synchronous>, transform_indices = @transform_4, window_bounds = array<i64: 256, 64>}, {pipeline_mode = #tpu.pipeline_mode<synchronous>, transform_indices = @transform_5, window_bounds = array<i64: 9, 64>}, {pipeline_mode = #tpu.pipeline_mode<synchronous>, transform_indices = @transform_6, window_bounds = array<i64: 8, 72>}, {pipeline_mode = #tpu.pipeline_mode<synchronous>, transform_indices = @transform_7, window_bounds = array<i64: 8, 1>}, {pipeline_mode = #tpu.pipeline_mode<synchronous>, transform_indices = @transform_8, window_bounds = array<i64: 512, 32>}, {pipeline_mode = #tpu.pipeline_mode<synchronous>, transform_indices = @transform_9, window_bounds = array<i64: 1, 32>}, {pipeline_mode = #tpu.pipeline_mode<synchronous>, transform_indices = @transform_10, window_bounds = array<i64: 32, 128>}, {pipeline_mode = #tpu.pipeline_mode<synchronous>, transform_indices = @transform_11, window_bounds = array<i64: 1, 128>}, {transform_indices = @transform_12, window_bounds = array<i64: 1, 1, 128>}]} {
    %c0 = arith.constant 0 : index
    %c0_0 = arith.constant 0 : index
    %c0_1 = arith.constant 0 : index
    %0 = vector.load %arg1[%c0, %c0_0, %c0_1] : memref<1x8x256xf32, #tpu.memory_space<vmem>>, vector<1x8x256xf32>
    %1 = vector.shape_cast %0 : vector<1x8x256xf32> to vector<8x256xf32>
    %c17_i32 = arith.constant 17 : i32
    %2 = tpu.dynamic_rotate %1 by %c17_i32 dim 1 : vector<8x256xf32>, i32 -> vector<8x256xf32>
    %c0_2 = arith.constant 0 : index
    %c0_3 = arith.constant 0 : index
    %3 = vector.load %arg2[%c0_2, %c0_3] : memref<9x256xf32, #tpu.memory_space<vmem>>, vector<1x256xf32>
    %4 = vector.broadcast %3 : vector<1x256xf32> to vector<8x256xf32>
    %5 = arith.mulf %2, %4 : vector<8x256xf32>
    %c0_4 = arith.constant 0 : index
    %c0_5 = arith.constant 0 : index
    %6 = vector.load %arg14[%c0_4, %c0_5] : memref<72x256xf32, #tpu.memory_space<vmem>>, vector<8x256xf32>
    tpu.vector_store %arg14[%c0_4, %c0_5], %5 {strides = array<i32>} : memref<72x256xf32, #tpu.memory_space<vmem>>, vector<8x256xf32>,
    %c16_i32 = arith.constant 16 : i32
    %7 = tpu.dynamic_rotate %1 by %c16_i32 dim 1 : vector<8x256xf32>, i32 -> vector<8x256xf32>
    %c1 = arith.constant 1 : index
    %c0_6 = arith.constant 0 : index
    %8 = vector.load %arg2[%c1, %c0_6] : memref<9x256xf32, #tpu.memory_space<vmem>>, vector<1x256xf32>
    %9 = vector.broadcast %8 : vector<1x256xf32> to vector<8x256xf32>
    %10 = arith.mulf %7, %9 : vector<8x256xf32>
    %c8 = arith.constant 8 : index
    %c0_7 = arith.constant 0 : index
    %11 = vector.load %arg14[%c8, %c0_7] : memref<72x256xf32, #tpu.memory_space<vmem>>, vector<8x256xf32>
    tpu.vector_store %arg14[%c8, %c0_7], %10 {strides = array<i32>} : memref<72x256xf32, #tpu.memory_space<vmem>>, vector<8x256xf32>,
    %c15_i32 = arith.constant 15 : i32
    %12 = tpu.dynamic_rotate %1 by %c15_i32 dim 1 : vector<8x256xf32>, i32 -> vector<8x256xf32>
    %c2 = arith.constant 2 : index
    %c0_8 = arith.constant 0 : index
    %13 = vector.load %arg2[%c2, %c0_8] : memref<9x256xf32, #tpu.memory_space<vmem>>, vector<1x256xf32>
    %14 = vector.broadcast %13 : vector<1x256xf32> to vector<8x256xf32>
    %15 = arith.mulf %12, %14 : vector<8x256xf32>
    %c16 = arith.constant 16 : index
    %c0_9 = arith.constant 0 : index
    %16 = vector.load %arg14[%c16, %c0_9] : memref<72x256xf32, #tpu.memory_space<vmem>>, vector<8x256xf32>
    tpu.vector_store %arg14[%c16, %c0_9], %15 {strides = array<i32>} : memref<72x256xf32, #tpu.memory_space<vmem>>, vector<8x256xf32>,
    %c1_i32 = arith.constant 1 : i32
    %17 = tpu.dynamic_rotate %1 by %c1_i32 dim 1 : vector<8x256xf32>, i32 -> vector<8x256xf32>
    %c3 = arith.constant 3 : index
    %c0_10 = arith.constant 0 : index
    %18 = vector.load %arg2[%c3, %c0_10] : memref<9x256xf32, #tpu.memory_space<vmem>>, vector<1x256xf32>
    %19 = vector.broadcast %18 : vector<1x256xf32> to vector<8x256xf32>
    %20 = arith.mulf %17, %19 : vector<8x256xf32>
    %c24 = arith.constant 24 : index
    %c0_11 = arith.constant 0 : index
    %21 = vector.load %arg14[%c24, %c0_11] : memref<72x256xf32, #tpu.memory_space<vmem>>, vector<8x256xf32>
    tpu.vector_store %arg14[%c24, %c0_11], %20 {strides = array<i32>} : memref<72x256xf32, #tpu.memory_space<vmem>>, vector<8x256xf32>,
    %c32 = arith.constant 32 : index
    %c0_12 = arith.constant 0 : index
    %22 = vector.load %arg14[%c32, %c0_12] : memref<72x256xf32, #tpu.memory_space<vmem>>, vector<8x256xf32>
    tpu.vector_store %arg14[%c32, %c0_12], %1 {strides = array<i32>} : memref<72x256xf32, #tpu.memory_space<vmem>>, vector<8x256xf32>,
    %c255_i32 = arith.constant 255 : i32
    %23 = tpu.dynamic_rotate %1 by %c255_i32 dim 1 : vector<8x256xf32>, i32 -> vector<8x256xf32>
    %c5 = arith.constant 5 : index
    %c0_13 = arith.constant 0 : index
    %24 = vector.load %arg2[%c5, %c0_13] : memref<9x256xf32, #tpu.memory_space<vmem>>, vector<1x256xf32>
    %25 = vector.broadcast %24 : vector<1x256xf32> to vector<8x256xf32>
    %26 = arith.mulf %23, %25 : vector<8x256xf32>
    %c40 = arith.constant 40 : index
    %c0_14 = arith.constant 0 : index
    %27 = vector.load %arg14[%c40, %c0_14] : memref<72x256xf32, #tpu.memory_space<vmem>>, vector<8x256xf32>
    tpu.vector_store %arg14[%c40, %c0_14], %26 {strides = array<i32>} : memref<72x256xf32, #tpu.memory_space<vmem>>, vector<8x256xf32>,
    %c241_i32 = arith.constant 241 : i32
    %28 = tpu.dynamic_rotate %1 by %c241_i32 dim 1 : vector<8x256xf32>, i32 -> vector<8x256xf32>
    %c6 = arith.constant 6 : index
    %c0_15 = arith.constant 0 : index
    %29 = vector.load %arg2[%c6, %c0_15] : memref<9x256xf32, #tpu.memory_space<vmem>>, vector<1x256xf32>
    %30 = vector.broadcast %29 : vector<1x256xf32> to vector<8x256xf32>
    %31 = arith.mulf %28, %30 : vector<8x256xf32>
    %c48 = arith.constant 48 : index
    %c0_16 = arith.constant 0 : index
    %32 = vector.load %arg14[%c48, %c0_16] : memref<72x256xf32, #tpu.memory_space<vmem>>, vector<8x256xf32>
    tpu.vector_store %arg14[%c48, %c0_16], %31 {strides = array<i32>} : memref<72x256xf32, #tpu.memory_space<vmem>>, vector<8x256xf32>,
    %c240_i32 = arith.constant 240 : i32
    %33 = tpu.dynamic_rotate %1 by %c240_i32 dim 1 : vector<8x256xf32>, i32 -> vector<8x256xf32>
    %c7 = arith.constant 7 : index
    %c0_17 = arith.constant 0 : index
    %34 = vector.load %arg2[%c7, %c0_17] : memref<9x256xf32, #tpu.memory_space<vmem>>, vector<1x256xf32>
    %35 = vector.broadcast %34 : vector<1x256xf32> to vector<8x256xf32>
    %36 = arith.mulf %33, %35 : vector<8x256xf32>
    %c56 = arith.constant 56 : index
    %c0_18 = arith.constant 0 : index
    %37 = vector.load %arg14[%c56, %c0_18] : memref<72x256xf32, #tpu.memory_space<vmem>>, vector<8x256xf32>
    tpu.vector_store %arg14[%c56, %c0_18], %36 {strides = array<i32>} : memref<72x256xf32, #tpu.memory_space<vmem>>, vector<8x256xf32>,
    %c239_i32 = arith.constant 239 : i32
    %38 = tpu.dynamic_rotate %1 by %c239_i32 dim 1 : vector<8x256xf32>, i32 -> vector<8x256xf32>
    %c8_19 = arith.constant 8 : index
    %c0_20 = arith.constant 0 : index
    %39 = vector.load %arg2[%c8_19, %c0_20] : memref<9x256xf32, #tpu.memory_space<vmem>>, vector<1x256xf32>
    %40 = vector.broadcast %39 : vector<1x256xf32> to vector<8x256xf32>
    %41 = arith.mulf %38, %40 : vector<8x256xf32>
    %c64 = arith.constant 64 : index
    %c0_21 = arith.constant 0 : index
    %42 = vector.load %arg14[%c64, %c0_21] : memref<72x256xf32, #tpu.memory_space<vmem>>, vector<8x256xf32>
    tpu.vector_store %arg14[%c64, %c0_21], %41 {strides = array<i32>} : memref<72x256xf32, #tpu.memory_space<vmem>>, vector<8x256xf32>,
    %c0_22 = arith.constant 0 : index
    %c0_23 = arith.constant 0 : index
    %43 = vector.load %arg3[%c0_22, %c0_23] : memref<8x72xbf16, #tpu.memory_space<vmem>>, vector<8x72xbf16>
    %c0_24 = arith.constant 0 : index
    %c0_25 = arith.constant 0 : index
    %44 = vector.load %arg14[%c0_24, %c0_25] : memref<72x256xf32, #tpu.memory_space<vmem>>, vector<72x256xf32>
    %45 = arith.truncf %44 : vector<72x256xf32> to vector<72x256xbf16>
    %cst = arith.constant dense<0.000000e+00> : vector<8x256xf32>
    %46 = tpu.matmul %43, %45, %cst {dimension_numbers = #tpu.dot_dimension_numbers<[1], [0], [0], [1], [0, 0, 1, 1], [], []>} : vector<8x72xbf16>, vector<72x256xbf16>, vector<8x256xf32> -> vector<8x256xf32>
    %c0_26 = arith.constant 0 : index
    %c0_27 = arith.constant 0 : index
    %47 = vector.load %arg4[%c0_26, %c0_27] : memref<8x1xf32, #tpu.memory_space<vmem>>, vector<8x1xf32>
    %48 = vector.broadcast %47 : vector<8x1xf32> to vector<8x256xf32>
    %49 = arith.addf %46, %48 : vector<8x256xf32>
    %cst_28 = arith.constant 0.000000e+00 : f32
    %50 = vector.broadcast %cst_28 : f32 to vector<8x256xf32>
    %51 = arith.maximumf %49, %50 : vector<8x256xf32>
    %c255_i32_29 = arith.constant 255 : i32
    %52 = tpu.dynamic_rotate %51 by %c255_i32_29 dim 1 : vector<8x256xf32>, i32 -> vector<8x256xf32>
    %53 = arith.maximumf %51, %52 : vector<8x256xf32>
    %c240_i32_30 = arith.constant 240 : i32
    %54 = tpu.dynamic_rotate %53 by %c240_i32_30 dim 1 : vector<8x256xf32>, i32 -> vector<8x256xf32>
    %55 = arith.maximumf %53, %54 : vector<8x256xf32>
    %56 = arith.truncf %55 : vector<8x256xf32> to vector<8x256xbf16>
    %c0_31 = arith.constant 0 : index
    %c0_32 = arith.constant 0 : index
    %57 = vector.load %arg5[%c0_31, %c0_32] : memref<256x64xbf16, #tpu.memory_space<vmem>>, vector<256x64xbf16>
    %cst_33 = arith.constant dense<0.000000e+00> : vector<8x64xf32>
    %58 = tpu.matmul %56, %57, %cst_33 {dimension_numbers = #tpu.dot_dimension_numbers<[1], [0], [0], [1], [0, 0, 1, 1], [], []>} : vector<8x256xbf16>, vector<256x64xbf16>, vector<8x64xf32> -> vector<8x64xf32>
    %c9_i32 = arith.constant 9 : i32
    %59 = tpu.dynamic_rotate %58 by %c9_i32 dim 1 : vector<8x64xf32>, i32 -> vector<8x64xf32>
    %c0_34 = arith.constant 0 : index
    %c0_35 = arith.constant 0 : index
    %60 = vector.load %arg6[%c0_34, %c0_35] : memref<9x64xf32, #tpu.memory_space<vmem>>, vector<1x64xf32>
    %61 = vector.broadcast %60 : vector<1x64xf32> to vector<8x64xf32>
    %62 = arith.mulf %59, %61 : vector<8x64xf32>
    %c0_36 = arith.constant 0 : index
    %c0_37 = arith.constant 0 : index
    %63 = vector.load %arg15[%c0_36, %c0_37] : memref<72x64xf32, #tpu.memory_space<vmem>>, vector<8x64xf32>
    tpu.vector_store %arg15[%c0_36, %c0_37], %62 {strides = array<i32>} : memref<72x64xf32, #tpu.memory_space<vmem>>, vector<8x64xf32>,
    %c8_i32 = arith.constant 8 : i32
    %64 = tpu.dynamic_rotate %58 by %c8_i32 dim 1 : vector<8x64xf32>, i32 -> vector<8x64xf32>
    %c1_38 = arith.constant 1 : index
    %c0_39 = arith.constant 0 : index
    %65 = vector.load %arg6[%c1_38, %c0_39] : memref<9x64xf32, #tpu.memory_space<vmem>>, vector<1x64xf32>
    %66 = vector.broadcast %65 : vector<1x64xf32> to vector<8x64xf32>
    %67 = arith.mulf %64, %66 : vector<8x64xf32>
    %c8_40 = arith.constant 8 : index
    %c0_41 = arith.constant 0 : index
    %68 = vector.load %arg15[%c8_40, %c0_41] : memref<72x64xf32, #tpu.memory_space<vmem>>, vector<8x64xf32>
    tpu.vector_store %arg15[%c8_40, %c0_41], %67 {strides = array<i32>} : memref<72x64xf32, #tpu.memory_space<vmem>>, vector<8x64xf32>,
    %c7_i32 = arith.constant 7 : i32
    %69 = tpu.dynamic_rotate %58 by %c7_i32 dim 1 : vector<8x64xf32>, i32 -> vector<8x64xf32>
    %c2_42 = arith.constant 2 : index
    %c0_43 = arith.constant 0 : index
    %70 = vector.load %arg6[%c2_42, %c0_43] : memref<9x64xf32, #tpu.memory_space<vmem>>, vector<1x64xf32>
    %71 = vector.broadcast %70 : vector<1x64xf32> to vector<8x64xf32>
    %72 = arith.mulf %69, %71 : vector<8x64xf32>
    %c16_44 = arith.constant 16 : index
    %c0_45 = arith.constant 0 : index
    %73 = vector.load %arg15[%c16_44, %c0_45] : memref<72x64xf32, #tpu.memory_space<vmem>>, vector<8x64xf32>
    tpu.vector_store %arg15[%c16_44, %c0_45], %72 {strides = array<i32>} : memref<72x64xf32, #tpu.memory_space<vmem>>, vector<8x64xf32>,
    %c1_i32_46 = arith.constant 1 : i32
    %74 = tpu.dynamic_rotate %58 by %c1_i32_46 dim 1 : vector<8x64xf32>, i32 -> vector<8x64xf32>
    %c3_47 = arith.constant 3 : index
    %c0_48 = arith.constant 0 : index
    %75 = vector.load %arg6[%c3_47, %c0_48] : memref<9x64xf32, #tpu.memory_space<vmem>>, vector<1x64xf32>
    %76 = vector.broadcast %75 : vector<1x64xf32> to vector<8x64xf32>
    %77 = arith.mulf %74, %76 : vector<8x64xf32>
    %c24_49 = arith.constant 24 : index
    %c0_50 = arith.constant 0 : index
    %78 = vector.load %arg15[%c24_49, %c0_50] : memref<72x64xf32, #tpu.memory_space<vmem>>, vector<8x64xf32>
    tpu.vector_store %arg15[%c24_49, %c0_50], %77 {strides = array<i32>} : memref<72x64xf32, #tpu.memory_space<vmem>>, vector<8x64xf32>,
    %c32_51 = arith.constant 32 : index
    %c0_52 = arith.constant 0 : index
    %79 = vector.load %arg15[%c32_51, %c0_52] : memref<72x64xf32, #tpu.memory_space<vmem>>, vector<8x64xf32>
    tpu.vector_store %arg15[%c32_51, %c0_52], %58 {strides = array<i32>} : memref<72x64xf32, #tpu.memory_space<vmem>>, vector<8x64xf32>,
    %c63_i32 = arith.constant 63 : i32
    %80 = tpu.dynamic_rotate %58 by %c63_i32 dim 1 : vector<8x64xf32>, i32 -> vector<8x64xf32>
    %c5_53 = arith.constant 5 : index
    %c0_54 = arith.constant 0 : index
    %81 = vector.load %arg6[%c5_53, %c0_54] : memref<9x64xf32, #tpu.memory_space<vmem>>, vector<1x64xf32>
    %82 = vector.broadcast %81 : vector<1x64xf32> to vector<8x64xf32>
    %83 = arith.mulf %80, %82 : vector<8x64xf32>
    %c40_55 = arith.constant 40 : index
    %c0_56 = arith.constant 0 : index
    %84 = vector.load %arg15[%c40_55, %c0_56] : memref<72x64xf32, #tpu.memory_space<vmem>>, vector<8x64xf32>
    tpu.vector_store %arg15[%c40_55, %c0_56], %83 {strides = array<i32>} : memref<72x64xf32, #tpu.memory_space<vmem>>, vector<8x64xf32>,
    %c57_i32 = arith.constant 57 : i32
    %85 = tpu.dynamic_rotate %58 by %c57_i32 dim 1 : vector<8x64xf32>, i32 -> vector<8x64xf32>
    %c6_57 = arith.constant 6 : index
    %c0_58 = arith.constant 0 : index
    %86 = vector.load %arg6[%c6_57, %c0_58] : memref<9x64xf32, #tpu.memory_space<vmem>>, vector<1x64xf32>
    %87 = vector.broadcast %86 : vector<1x64xf32> to vector<8x64xf32>
    %88 = arith.mulf %85, %87 : vector<8x64xf32>
    %c48_59 = arith.constant 48 : index
    %c0_60 = arith.constant 0 : index
    %89 = vector.load %arg15[%c48_59, %c0_60] : memref<72x64xf32, #tpu.memory_space<vmem>>, vector<8x64xf32>
    tpu.vector_store %arg15[%c48_59, %c0_60], %88 {strides = array<i32>} : memref<72x64xf32, #tpu.memory_space<vmem>>, vector<8x64xf32>,
    %c56_i32 = arith.constant 56 : i32
    %90 = tpu.dynamic_rotate %58 by %c56_i32 dim 1 : vector<8x64xf32>, i32 -> vector<8x64xf32>
    %c7_61 = arith.constant 7 : index
    %c0_62 = arith.constant 0 : index
    %91 = vector.load %arg6[%c7_61, %c0_62] : memref<9x64xf32, #tpu.memory_space<vmem>>, vector<1x64xf32>
    %92 = vector.broadcast %91 : vector<1x64xf32> to vector<8x64xf32>
    %93 = arith.mulf %90, %92 : vector<8x64xf32>
    %c56_63 = arith.constant 56 : index
    %c0_64 = arith.constant 0 : index
    %94 = vector.load %arg15[%c56_63, %c0_64] : memref<72x64xf32, #tpu.memory_space<vmem>>, vector<8x64xf32>
    tpu.vector_store %arg15[%c56_63, %c0_64], %93 {strides = array<i32>} : memref<72x64xf32, #tpu.memory_space<vmem>>, vector<8x64xf32>,
    %c55_i32 = arith.constant 55 : i32
    %95 = tpu.dynamic_rotate %58 by %c55_i32 dim 1 : vector<8x64xf32>, i32 -> vector<8x64xf32>
    %c8_65 = arith.constant 8 : index
    %c0_66 = arith.constant 0 : index
    %96 = vector.load %arg6[%c8_65, %c0_66] : memref<9x64xf32, #tpu.memory_space<vmem>>, vector<1x64xf32>
    %97 = vector.broadcast %96 : vector<1x64xf32> to vector<8x64xf32>
    %98 = arith.mulf %95, %97 : vector<8x64xf32>
    %c64_67 = arith.constant 64 : index
    %c0_68 = arith.constant 0 : index
    %99 = vector.load %arg15[%c64_67, %c0_68] : memref<72x64xf32, #tpu.memory_space<vmem>>, vector<8x64xf32>
    tpu.vector_store %arg15[%c64_67, %c0_68], %98 {strides = array<i32>} : memref<72x64xf32, #tpu.memory_space<vmem>>, vector<8x64xf32>,
    %c0_69 = arith.constant 0 : index
    %c0_70 = arith.constant 0 : index
    %100 = vector.load %arg7[%c0_69, %c0_70] : memref<8x72xbf16, #tpu.memory_space<vmem>>, vector<8x72xbf16>
    %c0_71 = arith.constant 0 : index
    %c0_72 = arith.constant 0 : index
    %101 = vector.load %arg15[%c0_71, %c0_72] : memref<72x64xf32, #tpu.memory_space<vmem>>, vector<72x64xf32>
    %102 = arith.truncf %101 : vector<72x64xf32> to vector<72x64xbf16>
    %cst_73 = arith.constant dense<0.000000e+00> : vector<8x64xf32>
    %103 = tpu.matmul %100, %102, %cst_73 {dimension_numbers = #tpu.dot_dimension_numbers<[1], [0], [0], [1], [0, 0, 1, 1], [], []>} : vector<8x72xbf16>, vector<72x64xbf16>, vector<8x64xf32> -> vector<8x64xf32>
    %c0_74 = arith.constant 0 : index
    %c0_75 = arith.constant 0 : index
    %104 = vector.load %arg8[%c0_74, %c0_75] : memref<8x1xf32, #tpu.memory_space<vmem>>, vector<8x1xf32>
    %105 = vector.broadcast %104 : vector<8x1xf32> to vector<8x64xf32>
    %106 = arith.addf %103, %105 : vector<8x64xf32>
    %cst_76 = arith.constant 0.000000e+00 : f32
    %107 = vector.broadcast %cst_76 : f32 to vector<8x64xf32>
    %108 = arith.cmpf oge, %106, %107 : vector<8x64xf32>
    %cst_77 = arith.constant 1.000000e-01 : f32
    %109 = vector.broadcast %cst_77 : f32 to vector<8x64xf32>
    %110 = arith.mulf %109, %106 : vector<8x64xf32>
    %111 = arith.select %108, %106, %110 : vector<8x64xi1>, vector<8x64xf32>
    %112 = vector.extract_strided_slice %111 {offsets = [0, 0], sizes = [1, 64], strides = [1, 1]} : vector<8x64xf32> to vector<1x64xf32>
    %c0_78 = arith.constant 0 : index
    %c0_79 = arith.constant 0 : index
    %113 = vector.load %arg16[%c0_78, %c0_79] : memref<1x512xf32, #tpu.memory_space<vmem>>, vector<1x64xf32>
    tpu.vector_store %arg16[%c0_78, %c0_79], %112 {strides = array<i32>} : memref<1x512xf32, #tpu.memory_space<vmem>>, vector<1x64xf32>,
    %114 = vector.extract_strided_slice %111 {offsets = [1, 0], sizes = [1, 64], strides = [1, 1]} : vector<8x64xf32> to vector<1x64xf32>
    %c0_80 = arith.constant 0 : index
    %c64_81 = arith.constant 64 : index
    %115 = vector.load %arg16[%c0_80, %c64_81] : memref<1x512xf32, #tpu.memory_space<vmem>>, vector<1x64xf32>
    tpu.vector_store %arg16[%c0_80, %c64_81], %114 {strides = array<i32>} : memref<1x512xf32, #tpu.memory_space<vmem>>, vector<1x64xf32>,
    %116 = vector.extract_strided_slice %111 {offsets = [2, 0], sizes = [1, 64], strides = [1, 1]} : vector<8x64xf32> to vector<1x64xf32>
    %c0_82 = arith.constant 0 : index
    %c128 = arith.constant 128 : index
    %117 = vector.load %arg16[%c0_82, %c128] : memref<1x512xf32, #tpu.memory_space<vmem>>, vector<1x64xf32>
    tpu.vector_store %arg16[%c0_82, %c128], %116 {strides = array<i32>} : memref<1x512xf32, #tpu.memory_space<vmem>>, vector<1x64xf32>,
    %118 = vector.extract_strided_slice %111 {offsets = [3, 0], sizes = [1, 64], strides = [1, 1]} : vector<8x64xf32> to vector<1x64xf32>
    %c0_83 = arith.constant 0 : index
    %c192 = arith.constant 192 : index
    %119 = vector.load %arg16[%c0_83, %c192] : memref<1x512xf32, #tpu.memory_space<vmem>>, vector<1x64xf32>
    tpu.vector_store %arg16[%c0_83, %c192], %118 {strides = array<i32>} : memref<1x512xf32, #tpu.memory_space<vmem>>, vector<1x64xf32>,
    %120 = vector.extract_strided_slice %111 {offsets = [4, 0], sizes = [1, 64], strides = [1, 1]} : vector<8x64xf32> to vector<1x64xf32>
    %c0_84 = arith.constant 0 : index
    %c256 = arith.constant 256 : index
    %121 = vector.load %arg16[%c0_84, %c256] : memref<1x512xf32, #tpu.memory_space<vmem>>, vector<1x64xf32>
    tpu.vector_store %arg16[%c0_84, %c256], %120 {strides = array<i32>} : memref<1x512xf32, #tpu.memory_space<vmem>>, vector<1x64xf32>,
    %122 = vector.extract_strided_slice %111 {offsets = [5, 0], sizes = [1, 64], strides = [1, 1]} : vector<8x64xf32> to vector<1x64xf32>
    %c0_85 = arith.constant 0 : index
    %c320 = arith.constant 320 : index
    %123 = vector.load %arg16[%c0_85, %c320] : memref<1x512xf32, #tpu.memory_space<vmem>>, vector<1x64xf32>
    tpu.vector_store %arg16[%c0_85, %c320], %122 {strides = array<i32>} : memref<1x512xf32, #tpu.memory_space<vmem>>, vector<1x64xf32>,
    %124 = vector.extract_strided_slice %111 {offsets = [6, 0], sizes = [1, 64], strides = [1, 1]} : vector<8x64xf32> to vector<1x64xf32>
    %c0_86 = arith.constant 0 : index
    %c384 = arith.constant 384 : index
    %125 = vector.load %arg16[%c0_86, %c384] : memref<1x512xf32, #tpu.memory_space<vmem>>, vector<1x64xf32>
    tpu.vector_store %arg16[%c0_86, %c384], %124 {strides = array<i32>} : memref<1x512xf32, #tpu.memory_space<vmem>>, vector<1x64xf32>,
    %126 = vector.extract_strided_slice %111 {offsets = [7, 0], sizes = [1, 64], strides = [1, 1]} : vector<8x64xf32> to vector<1x64xf32>
    %c0_87 = arith.constant 0 : index
    %c448 = arith.constant 448 : index
    %127 = vector.load %arg16[%c0_87, %c448] : memref<1x512xf32, #tpu.memory_space<vmem>>, vector<1x64xf32>
    tpu.vector_store %arg16[%c0_87, %c448], %126 {strides = array<i32>} : memref<1x512xf32, #tpu.memory_space<vmem>>, vector<1x64xf32>,
    %c0_88 = arith.constant 0 : index
    %c0_89 = arith.constant 0 : index
    %128 = vector.load %arg16[%c0_88, %c0_89] : memref<1x512xf32, #tpu.memory_space<vmem>>, vector<1x512xf32>
    %129 = arith.truncf %128 : vector<1x512xf32> to vector<1x512xbf16>
    %c0_90 = arith.constant 0 : index
    %c0_91 = arith.constant 0 : index
    %130 = vector.load %arg9[%c0_90, %c0_91] : memref<512x32xbf16, #tpu.memory_space<vmem>>, vector<512x32xbf16>
    %cst_92 = arith.constant dense<0.000000e+00> : vector<1x32xf32>
    %131 = tpu.matmul %129, %130, %cst_92 {dimension_numbers = #tpu.dot_dimension_numbers<[1], [0], [0], [1], [0, 0, 1, 1], [], []>} : vector<1x512xbf16>, vector<512x32xbf16>, vector<1x32xf32> -> vector<1x32xf32>
    %c0_93 = arith.constant 0 : index
    %c0_94 = arith.constant 0 : index
    %132 = vector.load %arg10[%c0_93, %c0_94] : memref<1x32xf32, #tpu.memory_space<vmem>>, vector<1x32xf32>
    %133 = arith.addf %131, %132 : vector<1x32xf32>
    %cst_95 = arith.constant 0.000000e+00 : f32
    %134 = vector.broadcast %cst_95 : f32 to vector<1x32xf32>
    %135 = arith.maximumf %133, %134 : vector<1x32xf32>
    %136 = arith.truncf %135 : vector<1x32xf32> to vector<1x32xbf16>
    %c0_96 = arith.constant 0 : index
    %c0_97 = arith.constant 0 : index
    %137 = vector.load %arg11[%c0_96, %c0_97] : memref<32x128xbf16, #tpu.memory_space<vmem>>, vector<32x128xbf16>
    %cst_98 = arith.constant dense<0.000000e+00> : vector<1x128xf32>
    %138 = tpu.matmul %136, %137, %cst_98 {dimension_numbers = #tpu.dot_dimension_numbers<[1], [0], [0], [1], [0, 0, 1, 1], [], []>} : vector<1x32xbf16>, vector<32x128xbf16>, vector<1x128xf32> -> vector<1x128xf32>
    %c0_99 = arith.constant 0 : index
    %c0_100 = arith.constant 0 : index
    %139 = vector.load %arg12[%c0_99, %c0_100] : memref<1x128xf32, #tpu.memory_space<vmem>>, vector<1x128xf32>
    %140 = arith.addf %138, %139 : vector<1x128xf32>
    %c0_101 = arith.constant 0 : index
    %c0_102 = arith.constant 0 : index
    %c0_103 = arith.constant 0 : index
    %141 = vector.load %arg13[%c0_101, %c0_102, %c0_103] : memref<1x1x128xf32, #tpu.memory_space<vmem>>, vector<1x1x128xf32>
    %142 = vector.shape_cast %141 : vector<1x1x128xf32> to vector<1x128xf32>
    %143 = vector.shape_cast %140 : vector<1x128xf32> to vector<1x1x128xf32>
    tpu.vector_store %arg13[%c0_101, %c0_102, %c0_103], %143 {strides = array<i32>} : memref<1x1x128xf32, #tpu.memory_space<vmem>>, vector<1x1x128xf32>,
    return
  }
  func.func @transform_0(%arg0: i32) -> (i32, i32, i32) {
    %c0_i32 = arith.constant 0 : i32
    %c0_i32_0 = arith.constant 0 : i32
    %c0_i32_1 = arith.constant 0 : i32
    return %arg0, %c0_i32, %c0_i32_0 : i32, i32, i32
  }
  func.func @transform_1(%arg0: i32) -> (i32, i32) {
    %c0_i32 = arith.constant 0 : i32
    %c0_i32_0 = arith.constant 0 : i32
    %c0_i32_1 = arith.constant 0 : i32
    return %c0_i32, %c0_i32_0 : i32, i32
  }
  func.func @transform_2(%arg0: i32) -> (i32, i32) {
    %c0_i32 = arith.constant 0 : i32
    %c0_i32_0 = arith.constant 0 : i32
    %c0_i32_1 = arith.constant 0 : i32
    return %c0_i32, %c0_i32_0 : i32, i32
  }
  func.func @transform_3(%arg0: i32) -> (i32, i32) {
    %c0_i32 = arith.constant 0 : i32
    %c0_i32_0 = arith.constant 0 : i32
    %c0_i32_1 = arith.constant 0 : i32
    return %c0_i32, %c0_i32_0 : i32, i32
  }
  func.func @transform_4(%arg0: i32) -> (i32, i32) {
    %c0_i32 = arith.constant 0 : i32
    %c0_i32_0 = arith.constant 0 : i32
    %c0_i32_1 = arith.constant 0 : i32
    return %c0_i32, %c0_i32_0 : i32, i32
  }
  func.func @transform_5(%arg0: i32) -> (i32, i32) {
    %c0_i32 = arith.constant 0 : i32
    %c0_i32_0 = arith.constant 0 : i32
    %c0_i32_1 = arith.constant 0 : i32
    return %c0_i32, %c0_i32_0 : i32, i32
  }
  func.func @transform_6(%arg0: i32) -> (i32, i32) {
    %c0_i32 = arith.constant 0 : i32
    %c0_i32_0 = arith.constant 0 : i32
    %c0_i32_1 = arith.constant 0 : i32
    return %c0_i32, %c0_i32_0 : i32, i32
  }
  func.func @transform_7(%arg0: i32) -> (i32, i32) {
    %c0_i32 = arith.constant 0 : i32
    %c0_i32_0 = arith.constant 0 : i32
    %c0_i32_1 = arith.constant 0 : i32
    return %c0_i32, %c0_i32_0 : i32, i32
  }
  func.func @transform_8(%arg0: i32) -> (i32, i32) {
    %c0_i32 = arith.constant 0 : i32
    %c0_i32_0 = arith.constant 0 : i32
    %c0_i32_1 = arith.constant 0 : i32
    return %c0_i32, %c0_i32_0 : i32, i32
  }
  func.func @transform_9(%arg0: i32) -> (i32, i32) {
    %c0_i32 = arith.constant 0 : i32
    %c0_i32_0 = arith.constant 0 : i32
    %c0_i32_1 = arith.constant 0 : i32
    return %c0_i32, %c0_i32_0 : i32, i32
  }
  func.func @transform_10(%arg0: i32) -> (i32, i32) {
    %c0_i32 = arith.constant 0 : i32
    %c0_i32_0 = arith.constant 0 : i32
    %c0_i32_1 = arith.constant 0 : i32
    return %c0_i32, %c0_i32_0 : i32, i32
  }
  func.func @transform_11(%arg0: i32) -> (i32, i32) {
    %c0_i32 = arith.constant 0 : i32
    %c0_i32_0 = arith.constant 0 : i32
    %c0_i32_1 = arith.constant 0 : i32
    return %c0_i32, %c0_i32_0 : i32, i32
  }
  func.func @transform_12(%arg0: i32) -> (i32, i32, i32) {
    %c0_i32 = arith.constant 0 : i32
    %c0_i32_0 = arith.constant 0 : i32
    %c0_i32_1 = arith.constant 0 : i32
    return %arg0, %c0_i32, %c0_i32_0 : i32, i32, i32
  }
}

</mosaic_0001>

<llo_original>
// kernel: fused_cnn_forward.1
$region0: #{fused_cnn_forward.1}
  #allocation0 [shape = 'u32[]', space=smem, size = 0x4, offset = 0x4, fixed_abs, tag = 'smem constant byte address 0x4 - core index']
  #allocation1 [shape = 'u32[144,128]{1,0:T(1,128)}', space=vmem, size = 0x12000, scoped, tag = 'internal scratch']
  #allocation2 [shape = 'f32[72,256]{1,0:T(8,128)}', space=vmem, size = 0x12000, scoped, tag = 'scratch operand']
  #allocation3 [shape = 'f32[72,64]{1,0:T(8,128)}', space=vmem, size = 0x9000, scoped, tag = 'scratch operand']
  #allocation4 [shape = 'f32[1,512]{1,0:T(1,128)}', space=vmem, size = 0x800, scoped, tag = 'scratch operand']
  %s0 = inlined_call_operand.vmem [shape: f32[2,8,256], index: 0, kind: input, shape index: {}]
  %s1 = inlined_call_operand.vmem [shape: f32[9,256], index: 1, kind: input, shape index: {}]
  %s2 = inlined_call_operand.vmem [shape: bf16[8,72], index: 2, kind: input, shape index: {}]
  %s3 = inlined_call_operand.vmem [shape: f32[8,1], index: 3, kind: input, shape index: {}]
  %s4 = inlined_call_operand.vmem [shape: bf16[256,64], index: 4, kind: input, shape index: {}]
  %s5 = inlined_call_operand.vmem [shape: f32[9,64], index: 5, kind: input, shape index: {}]
  %s6 = inlined_call_operand.vmem [shape: bf16[8,72], index: 6, kind: input, shape index: {}]
  %s7 = inlined_call_operand.vmem [shape: f32[8,1], index: 7, kind: input, shape index: {}]
  %s8 = inlined_call_operand.hbm [shape: bf16[512,32], index: 8, kind: input, shape index: {}]
  %s9 = inlined_call_operand.vmem [shape: f32[1,32], index: 9, kind: input, shape index: {}]
  %s10 = inlined_call_operand.vmem [shape: bf16[32,128], index: 10, kind: input, shape index: {}]
  %s11 = inlined_call_operand.vmem [shape: f32[1,128], index: 11, kind: input, shape index: {}]
  %s12 = inlined_call_operand.hbm [shape: f32[2,1,128], index: 12, kind: output, shape index: {}]
  %s13 = sld [smem:[#allocation0]]
  $region85: #{fused_cnn_forward.1} parent=0
    _
  %s15 = ssub.s32 1, %s13
  %s16 = scalar_select 0, %s15, %s13
  $region1: #{fused_cnn_forward.1} parent=0
    #allocation5 [shape = 'u8[131072]{0}', space=vmem, size = 0x20000, scoped, tag = 'input window, operand 8, single buffered']
    #allocation6 [shape = 's32[2]{0}', space=sflag, size = 0x8, scoped, tag = 'scoped memory for fused_cnn_forward.1']
    #allocation7 [shape = 's32[2]{0}', space=sflag, size = 0x8, scoped, tag = 'scoped memory for fused_cnn_forward.1']
    #allocation8 [shape = 'u8[1024]{0}', space=vmem, size = 0x400, scoped, tag = 'output window, operand 0']
    %17 = vsyncpa [#allocation6], 0
    %18 = vsyncpa [#allocation7], 0
    %s19 = scalar_lea.sflag [#allocation7], 1
    %20 = vsyncpa %s19, 0
    loop: start=0, step=1, limit=4
    $region2: #{fused_cnn_forward.1} parent=1 // loop_pre_header
      _
    $region3: #{fused_cnn_forward.1} parent=1 // loop_header
      %s22 = sphi 0, %s26
      %p23 = scmp.ge.s32.totalorder %s22, 4
      %s32 = sphi 0, %s34
      %s35 = sphi 0, %s32
      %s36 = sphi 0, %s35
      %s52 = sphi 0, %s36
      %s56 = sphi 0, %s56
      %s58 = sphi 0, %s56
      %s59 = sphi 0, %s58
      %s73 = sphi 0, %s59
      %s77 = sphi 0, %s77
      %s79 = sphi 0, %s77
      %s80 = sphi 0, %s79
      %s94 = sphi 0, %s80
      %s98 = sphi 0, %s98
      %s100 = sphi 0, %s98
      %s101 = sphi 0, %s100
      %s115 = sphi 0, %s101
      %s119 = sphi 0, %s119
      %s121 = sphi 0, %s119
      %s122 = sphi 0, %s121
      %s136 = sphi 0, %s122
      %s140 = sphi 0, %s140
      %s142 = sphi 0, %s140
      %s143 = sphi 0, %s142
      %s157 = sphi 0, %s143
      %s161 = sphi 0, %s161
      %s163 = sphi 0, %s161
      %s164 = sphi 0, %s163
      %s178 = sphi 0, %s164
      %s182 = sphi 0, %s182
      %s184 = sphi 0, %s182
      %s185 = sphi 0, %s184
      %s199 = sphi 0, %s185
      %s203 = sphi 0, %s203
      %s205 = sphi 0, %s203
      %s206 = sphi 0, %s205
      %s220 = sphi 0, %s206
      %s224 = sphi 0, %s224
      %s226 = sphi 0, %s224
      %s227 = sphi 0, %s226
      %s241 = sphi 0, %s227
      %s245 = sphi 0, %s245
      %s247 = sphi 0, %s245
      %s248 = sphi 0, %s247
      %s262 = sphi 0, %s248
      %s266 = sphi 0, %s266
      %s268 = sphi 0, %s266
      %s269 = sphi 0, %s268
      %s283 = sphi 0, %s269
      %s289 = sphi 0, %s291
      %s292 = sphi 0, %s289
      %s293 = sphi 0, %s292
      %s309 = sphi 0, %s293
    $region4: #{fused_cnn_forward.1} parent=1 // loop_header_branch
      %25 = sbr.rel (%p23) target = $region8
    $region5: #{fused_cnn_forward.1} parent=1 // loop_body
      %s27 = ssub.s32 %s22, 1
      %s28 = ssub.s32 %s22, 2
      %s29 = sadd.s32 %s22, 1
      %s30 = ssub.s32 %s22, %s29
      %p31 = scmp.eq.s32.totalorder %s30, 0
      %s33 = sadd.s32 %s32, 1
      %s34 = scalar_select %p31, %s32, %s33
      %p37 = pneg %p31
      %p38 = scmp.eq.s32.totalorder %s22, 1
      %p39 = por %p37, %p38
      %p40 = scmp.ne.s32.totalorder %s32, %s35
      %p41 = scmp.eq.s32.totalorder %s22, 0
      %p42 = por %p40, %p41
      %p43 = scmp.ne.s32.totalorder %s32, %s35
      %p44 = scmp.eq.s32.totalorder %s27, 1
      %p45 = por %p43, %p44
      %p46 = scmp.ne.s32.totalorder %s35, %s36
      %p47 = scmp.eq.s32.totalorder %s27, 0
      %p48 = por %p46, %p47
      %p49 = scmp.ne.s32.totalorder %s35, %s36
      %p50 = scmp.eq.s32.totalorder %s28, 1
      %p51 = por %p49, %p50
      %p53 = scmp.ne.s32.totalorder %s36, %s52
      %p54 = scmp.eq.s32.totalorder %s28, 0
      %p55 = por %p53, %p54
      %s57 = sadd.s32 %s56, 1
      %p60 = scmp.eq.s32.totalorder %s22, 1
      %p61 = scmp.ne.s32.totalorder %s56, %s58
      %p62 = scmp.eq.s32.totalorder %s22, 0
      %p63 = por %p61, %p62
      %p64 = scmp.ne.s32.totalorder %s56, %s58
      %p65 = scmp.eq.s32.totalorder %s27, 1
      %p66 = por %p64, %p65
      %p67 = scmp.ne.s32.totalorder %s58, %s59
      %p68 = scmp.eq.s32.totalorder %s27, 0
      %p69 = por %p67, %p68
      %p70 = scmp.ne.s32.totalorder %s58, %s59
      %p71 = scmp.eq.s32.totalorder %s28, 1
      %p72 = por %p70, %p71
      %p74 = scmp.ne.s32.totalorder %s59, %s73
      %p75 = scmp.eq.s32.totalorder %s28, 0
      %p76 = por %p74, %p75
      %s78 = sadd.s32 %s77, 1
      %p81 = scmp.eq.s32.totalorder %s22, 1
      %p82 = scmp.ne.s32.totalorder %s77, %s79
      %p83 = scmp.eq.s32.totalorder %s22, 0
      %p84 = por %p82, %p83
      %p85 = scmp.ne.s32.totalorder %s77, %s79
      %p86 = scmp.eq.s32.totalorder %s27, 1
      %p87 = por %p85, %p86
      %p88 = scmp.ne.s32.totalorder %s79, %s80
      %p89 = scmp.eq.s32.totalorder %s27, 0
      %p90 = por %p88, %p89
      %p91 = scmp.ne.s32.totalorder %s79, %s80
      %p92 = scmp.eq.s32.totalorder %s28, 1
      %p93 = por %p91, %p92
      %p95 = scmp.ne.s32.totalorder %s80, %s94
      %p96 = scmp.eq.s32.totalorder %s28, 0
      %p97 = por %p95, %p96
      %s99 = sadd.s32 %s98, 1
      %p102 = scmp.eq.s32.totalorder %s22, 1
      %p103 = scmp.ne.s32.totalorder %s98, %s100
      %p104 = scmp.eq.s32.totalorder %s22, 0
      %p105 = por %p103, %p104
      %p106 = scmp.ne.s32.totalorder %s98, %s100
      %p107 = scmp.eq.s32.totalorder %s27, 1
      %p108 = por %p106, %p107
      %p109 = scmp.ne.s32.totalorder %s100, %s101
      %p110 = scmp.eq.s32.totalorder %s27, 0
      %p111 = por %p109, %p110
      %p112 = scmp.ne.s32.totalorder %s100, %s101
      %p113 = scmp.eq.s32.totalorder %s28, 1
      %p114 = por %p112, %p113
      %p116 = scmp.ne.s32.totalorder %s101, %s115
      %p117 = scmp.eq.s32.totalorder %s28, 0
      %p118 = por %p116, %p117
      %s120 = sadd.s32 %s119, 1
      %p123 = scmp.eq.s32.totalorder %s22, 1
      %p124 = scmp.ne.s32.totalorder %s119, %s121
      %p125 = scmp.eq.s32.totalorder %s22, 0
      %p126 = por %p124, %p125
      %p127 = scmp.ne.s32.totalorder %s119, %s121
      %p128 = scmp.eq.s32.totalorder %s27, 1
      %p129 = por %p127, %p128
      %p130 = scmp.ne.s32.totalorder %s121, %s122
      %p131 = scmp.eq.s32.totalorder %s27, 0
      %p132 = por %p130, %p131
      %p133 = scmp.ne.s32.totalorder %s121, %s122
      %p134 = scmp.eq.s32.totalorder %s28, 1
      %p135 = por %p133, %p134
      %p137 = scmp.ne.s32.totalorder %s122, %s136
      %p138 = scmp.eq.s32.totalorder %s28, 0
      %p139 = por %p137, %p138
      %s141 = sadd.s32 %s140, 1
      %p144 = scmp.eq.s32.totalorder %s22, 1
      %p145 = scmp.ne.s32.totalorder %s140, %s142
      %p146 = scmp.eq.s32.totalorder %s22, 0
      %p147 = por %p145, %p146
      %p148 = scmp.ne.s32.totalorder %s140, %s142
      %p149 = scmp.eq.s32.totalorder %s27, 1
      %p150 = por %p148, %p149
      %p151 = scmp.ne.s32.totalorder %s142, %s143
      %p152 = scmp.eq.s32.totalorder %s27, 0
      %p153 = por %p151, %p152
      %p154 = scmp.ne.s32.totalorder %s142, %s143
      %p155 = scmp.eq.s32.totalorder %s28, 1
      %p156 = por %p154, %p155
      %p158 = scmp.ne.s32.totalorder %s143, %s157
      %p159 = scmp.eq.s32.totalorder %s28, 0
      %p160 = por %p158, %p159
      %s162 = sadd.s32 %s161, 1
      %p165 = scmp.eq.s32.totalorder %s22, 1
      %p166 = scmp.ne.s32.totalorder %s161, %s163
      %p167 = scmp.eq.s32.totalorder %s22, 0
      %p168 = por %p166, %p167
      %p169 = scmp.ne.s32.totalorder %s161, %s163
      %p170 = scmp.eq.s32.totalorder %s27, 1
      %p171 = por %p169, %p170
      %p172 = scmp.ne.s32.totalorder %s163, %s164
      %p173 = scmp.eq.s32.totalorder %s27, 0
      %p174 = por %p172, %p173
      %p175 = scmp.ne.s32.totalorder %s163, %s164
      %p176 = scmp.eq.s32.totalorder %s28, 1
      %p177 = por %p175, %p176
      %p179 = scmp.ne.s32.totalorder %s164, %s178
      %p180 = scmp.eq.s32.totalorder %s28, 0
      %p181 = por %p179, %p180
      %s183 = sadd.s32 %s182, 1
      %p186 = scmp.eq.s32.totalorder %s22, 1
      %p187 = scmp.ne.s32.totalorder %s182, %s184
      %p188 = scmp.eq.s32.totalorder %s22, 0
      %p189 = por %p187, %p188
      %p190 = scmp.ne.s32.totalorder %s182, %s184
      %p191 = scmp.eq.s32.totalorder %s27, 1
      %p192 = por %p190, %p191
      %p193 = scmp.ne.s32.totalorder %s184, %s185
      %p194 = scmp.eq.s32.totalorder %s27, 0
      %p195 = por %p193, %p194
      %p196 = scmp.ne.s32.totalorder %s184, %s185
      %p197 = scmp.eq.s32.totalorder %s28, 1
      %p198 = por %p196, %p197
      %p200 = scmp.ne.s32.totalorder %s185, %s199
      %p201 = scmp.eq.s32.totalorder %s28, 0
      %p202 = por %p200, %p201
      %s204 = sadd.s32 %s203, 1
      %p207 = scmp.eq.s32.totalorder %s22, 1
      %p208 = scmp.ne.s32.totalorder %s203, %s205
      %p209 = scmp.eq.s32.totalorder %s22, 0
      %p210 = por %p208, %p209
      %p211 = scmp.ne.s32.totalorder %s203, %s205
      %p212 = scmp.eq.s32.totalorder %s27, 1
      %p213 = por %p211, %p212
      %p214 = scmp.ne.s32.totalorder %s205, %s206
      %p215 = scmp.eq.s32.totalorder %s27, 0
      %p216 = por %p214, %p215
      %p217 = scmp.ne.s32.totalorder %s205, %s206
      %p218 = scmp.eq.s32.totalorder %s28, 1
      %p219 = por %p217, %p218
      %p221 = scmp.ne.s32.totalorder %s206, %s220
      %p222 = scmp.eq.s32.totalorder %s28, 0
      %p223 = por %p221, %p222
      %s225 = sadd.s32 %s224, 1
      %p228 = scmp.eq.s32.totalorder %s22, 1
      %p229 = scmp.ne.s32.totalorder %s224, %s226
      %p230 = scmp.eq.s32.totalorder %s22, 0
      %p231 = por %p229, %p230
      %p232 = scmp.ne.s32.totalorder %s224, %s226
      %p233 = scmp.eq.s32.totalorder %s27, 1
      %p234 = por %p232, %p233
      %p235 = scmp.ne.s32.totalorder %s226, %s227
      %p236 = scmp.eq.s32.totalorder %s27, 0
      %p237 = por %p235, %p236
      %p238 = scmp.ne.s32.totalorder %s226, %s227
      %p239 = scmp.eq.s32.totalorder %s28, 1
      %p240 = por %p238, %p239
      %p242 = scmp.ne.s32.totalorder %s227, %s241
      %p243 = scmp.eq.s32.totalorder %s28, 0
      %p244 = por %p242, %p243
      %s246 = sadd.s32 %s245, 1
      %p249 = scmp.eq.s32.totalorder %s22, 1
      %p250 = scmp.ne.s32.totalorder %s245, %s247
      %p251 = scmp.eq.s32.totalorder %s22, 0
      %p252 = por %p250, %p251
      %p253 = scmp.ne.s32.totalorder %s245, %s247
      %p254 = scmp.eq.s32.totalorder %s27, 1
      %p255 = por %p253, %p254
      %p256 = scmp.ne.s32.totalorder %s247, %s248
      %p257 = scmp.eq.s32.totalorder %s27, 0
      %p258 = por %p256, %p257
      %p259 = scmp.ne.s32.totalorder %s247, %s248
      %p260 = scmp.eq.s32.totalorder %s28, 1
      %p261 = por %p259, %p260
      %p263 = scmp.ne.s32.totalorder %s248, %s262
      %p264 = scmp.eq.s32.totalorder %s28, 0
      %p265 = por %p263, %p264
      %s267 = sadd.s32 %s266, 1
      %p270 = scmp.eq.s32.totalorder %s22, 1
      %p271 = scmp.ne.s32.totalorder %s266, %s268
      %p272 = scmp.eq.s32.totalorder %s22, 0
      %p273 = por %p271, %p272
      %p274 = scmp.ne.s32.totalorder %s266, %s268
      %p275 = scmp.eq.s32.totalorder %s27, 1
      %p276 = por %p274, %p275
      %p277 = scmp.ne.s32.totalorder %s268, %s269
      %p278 = scmp.eq.s32.totalorder %s27, 0
      %p279 = por %p277, %p278
      %p280 = scmp.ne.s32.totalorder %s268, %s269
      %p281 = scmp.eq.s32.totalorder %s28, 1
      %p282 = por %p280, %p281
      %p284 = scmp.ne.s32.totalorder %s269, %s283
      %p285 = scmp.eq.s32.totalorder %s28, 0
      %p286 = por %p284, %p285
      %s287 = ssub.s32 %s22, %s29
      %p288 = scmp.eq.s32.totalorder %s287, 0
      %s290 = sadd.s32 %s289, 1
      %s291 = scalar_select %p288, %s289, %s290
      %p294 = pneg %p288
      %p295 = scmp.eq.s32.totalorder %s22, 1
      %p296 = por %p294, %p295
      %p297 = scmp.ne.s32.totalorder %s289, %s292
      %p298 = scmp.eq.s32.totalorder %s22, 0
      %p299 = por %p297, %p298
      %p300 = scmp.ne.s32.totalorder %s289, %s292
      %p301 = scmp.eq.s32.totalorder %s27, 1
      %p302 = por %p300, %p301
      %p303 = scmp.ne.s32.totalorder %s292, %s293
      %p304 = scmp.eq.s32.totalorder %s27, 0
      %p305 = por %p303, %p304
      %p306 = scmp.ne.s32.totalorder %s292, %s293
      %p307 = scmp.eq.s32.totalorder %s28, 1
      %p308 = por %p306, %p307
      %p310 = scmp.ne.s32.totalorder %s293, %s309
      %p311 = scmp.eq.s32.totalorder %s28, 0
      %p312 = por %p310, %p311
      %p313 = scmp.le.s32.totalorder 1, %s22
      %p314 = scmp.lt.s32.totalorder %s22, 3
      %p315 = pnand %p313, %p314
      %p316 = pneg %p315
      // Predicated region
      $region9: #{fused_cnn_forward.1} parent=5 // pred_check
        _
      $region10: #{fused_cnn_forward.1} parent=5 // pred_check_branch
        %318 = sbr.rel (%p315) target = $region12
      $region11: #{fused_cnn_forward.1} parent=5 // pred_region
        %s319 = ssub.s32 %s22, 1
        // Predicated region
        $region13: #{fused_cnn_forward.1} parent=11 // pred_check
          %p320 = pneg %p69
        $region14: #{fused_cnn_forward.1} parent=11 // pred_check_branch
          %322 = sbr.rel (%p320) target = $region16
        $region15: #{fused_cnn_forward.1} parent=11 // pred_region
          _
        $region16: #{fused_cnn_forward.1} parent=11 // pred_fallthru
          _
        // Predicated region
        $region17: #{fused_cnn_forward.1} parent=11 // pred_check
          %p323 = pneg %p90
        $region18: #{fused_cnn_forward.1} parent=11 // pred_check_branch
          %325 = sbr.rel (%p323) target = $region20
        $region19: #{fused_cnn_forward.1} parent=11 // pred_region
          _
        $region20: #{fused_cnn_forward.1} parent=11 // pred_fallthru
          _
        // Predicated region
        $region21: #{fused_cnn_forward.1} parent=11 // pred_check
          %p326 = pneg %p111
        $region22: #{fused_cnn_forward.1} parent=11 // pred_check_branch
          %328 = sbr.rel (%p326) target = $region24
        $region23: #{fused_cnn_forward.1} parent=11 // pred_region
          _
        $region24: #{fused_cnn_forward.1} parent=11 // pred_fallthru
          _
        // Predicated region
        $region25: #{fused_cnn_forward.1} parent=11 // pred_check
          %p329 = pneg %p132
        $region26: #{fused_cnn_forward.1} parent=11 // pred_check_branch
          %331 = sbr.rel (%p329) target = $region28
        $region27: #{fused_cnn_forward.1} parent=11 // pred_region
          _
        $region28: #{fused_cnn_forward.1} parent=11 // pred_fallthru
          _
        // Predicated region
        $region29: #{fused_cnn_forward.1} parent=11 // pred_check
          %p332 = pneg %p153
        $region30: #{fused_cnn_forward.1} parent=11 // pred_check_branch
          %334 = sbr.rel (%p332) target = $region32
        $region31: #{fused_cnn_forward.1} parent=11 // pred_region
          _
        $region32: #{fused_cnn_forward.1} parent=11 // pred_fallthru
          _
        // Predicated region
        $region33: #{fused_cnn_forward.1} parent=11 // pred_check
          %p335 = pneg %p174
        $region34: #{fused_cnn_forward.1} parent=11 // pred_check_branch
          %337 = sbr.rel (%p335) target = $region36
        $region35: #{fused_cnn_forward.1} parent=11 // pred_region
          _
        $region36: #{fused_cnn_forward.1} parent=11 // pred_fallthru
          _
        // Predicated region
        $region37: #{fused_cnn_forward.1} parent=11 // pred_check
          %p338 = pneg %p195
        $region38: #{fused_cnn_forward.1} parent=11 // pred_check_branch
          %340 = sbr.rel (%p338) target = $region40
        $region39: #{fused_cnn_forward.1} parent=11 // pred_region
          _
        $region40: #{fused_cnn_forward.1} parent=11 // pred_fallthru
          _
        // Predicated region
        $region41: #{fused_cnn_forward.1} parent=11 // pred_check
          %p341 = pneg %p216
        $region42: #{fused_cnn_forward.1} parent=11 // pred_check_branch
          %343 = sbr.rel (%p341) target = $region44
        $region43: #{fused_cnn_forward.1} parent=11 // pred_region
          %s345 = ssub.s32 4096, 4096
          %346 = vsyncadd [#allocation6], %s345
          %s347 = sshll.u32 [#allocation5], 4
          %s348 = int_to_ptr.vmem [resolvable:$true] %s347
          %353 = dma.hbm_to_vmem [thread:$0]  %s8, 4096, %s348, [#allocation6], 64, 64, 4
        $region44: #{fused_cnn_forward.1} parent=11 // pred_fallthru
          _
        // Predicated region
        $region45: #{fused_cnn_forward.1} parent=11 // pred_check
          %p354 = pneg %p237
        $region46: #{fused_cnn_forward.1} parent=11 // pred_check_branch
          %356 = sbr.rel (%p354) target = $region48
        $region47: #{fused_cnn_forward.1} parent=11 // pred_region
          _
        $region48: #{fused_cnn_forward.1} parent=11 // pred_fallthru
          _
        // Predicated region
        $region49: #{fused_cnn_forward.1} parent=11 // pred_check
          %p357 = pneg %p258
        $region50: #{fused_cnn_forward.1} parent=11 // pred_check_branch
          %359 = sbr.rel (%p357) target = $region52
        $region51: #{fused_cnn_forward.1} parent=11 // pred_region
          _
        $region52: #{fused_cnn_forward.1} parent=11 // pred_fallthru
          _
        // Predicated region
        $region53: #{fused_cnn_forward.1} parent=11 // pred_check
          %p360 = pneg %p279
        $region54: #{fused_cnn_forward.1} parent=11 // pred_check_branch
          %362 = sbr.rel (%p360) target = $region56
        $region55: #{fused_cnn_forward.1} parent=11 // pred_region
          _
        $region56: #{fused_cnn_forward.1} parent=11 // pred_fallthru
          _
      $region12: #{fused_cnn_forward.1} parent=5 // pred_fallthru
        _
      %p363 = scmp.lt.s32.totalorder %s22, 2
      // Predicated region
      $region57: #{fused_cnn_forward.1} parent=5 // pred_check
        %p364 = pneg %p363
      $region58: #{fused_cnn_forward.1} parent=5 // pred_check_branch
        %366 = sbr.rel (%p364) target = $region60
      $region59: #{fused_cnn_forward.1} parent=5 // pred_region
        // Predicated region
        $region61: #{fused_cnn_forward.1} parent=59 // pred_check
          %p367 = pneg %p42
        $region62: #{fused_cnn_forward.1} parent=59 // pred_check_branch
          %369 = sbr.rel (%p367) target = $region64
        $region63: #{fused_cnn_forward.1} parent=59 // pred_region
          %p370 = scmp.lt.s32.totalorder %s22, 1
          %s371 = scalar_select %p370, %s22, 1
          %s372 = smul.addr %s371, 2
          %s373 = smul.addr %s372, 8
          %s374 = scalar_lea.vmem %s0, %s373
        $region64: #{fused_cnn_forward.1} parent=59 // pred_fallthru
          _
      $region60: #{fused_cnn_forward.1} parent=5 // pred_fallthru
        _
      %p375 = scmp.le.s32.totalorder 1, %s22
      %p376 = scmp.lt.s32.totalorder %s22, 3
      %p377 = pnand %p375, %p376
      %p378 = pneg %p377
      // Predicated region
      $region65: #{fused_cnn_forward.1} parent=5 // pred_check
        _
      $region66: #{fused_cnn_forward.1} parent=5 // pred_check_branch
        %380 = sbr.rel (%p377) target = $region68
      $region67: #{fused_cnn_forward.1} parent=5 // pred_region
        %s381 = ssub.s32 %s22, 1
        // Predicated region
        $region69: #{fused_cnn_forward.1} parent=67 // pred_check
          %p382 = pneg %p216
        $region70: #{fused_cnn_forward.1} parent=67 // pred_check_branch
          %384 = sbr.rel (%p382) target = $region72
        $region71: #{fused_cnn_forward.1} parent=67 // pred_region
          %385 = dma.done [#allocation6], 4096
        $region72: #{fused_cnn_forward.1} parent=67 // pred_fallthru
          _
        %p386 = scmp.lt.s32.totalorder %s27, 1
        %s387 = scalar_select %p386, %s27, 1
        %s388 = smul.addr %s387, 2
        %s389 = smul.addr %s388, 8
        %s390 = scalar_lea.vmem %s0, %s389
        %p391 = pneg %p48
        %p392 = pneg %p45
        %p393 = pneg %p69
        %p394 = pneg %p66
        %p395 = pneg %p90
        %p396 = pneg %p87
        %p397 = pneg %p111
        %p398 = pneg %p108
        %p399 = pneg %p132
        %p400 = pneg %p129
        %p401 = pneg %p153
        %p402 = pneg %p150
        %p403 = pneg %p174
        %p404 = pneg %p171
        %p405 = pneg %p195
        %p406 = pneg %p192
        %p407 = pneg %p216
        %p408 = pneg %p213
        %p409 = pneg %p237
        %p410 = pneg %p234
        %p411 = pneg %p258
        %p412 = pneg %p255
        %p413 = pneg %p279
        %p414 = pneg %p276
        %p415 = pneg %p305
        %p416 = pneg %p302
        %s417 = sand.u32 %s292, 1
        %s418 = scalar_lea.sflag [#allocation7], %s417
        %s419 = sand.u32 %s292, 1
        %s420 = scalar_lea.vmem [#allocation8], %s419
        %p421 = scmp.lt.s32.totalorder %s27, 1
        %s422 = scalar_select %p421, %s27, 1
        %s423 = smul.addr %s422, 2
        %s424 = smul.addr %s423, 8
        %s425 = scalar_lea.vmem %s0, %s424
        %v427 = vld [vmem:[%s425] sm:$0xff]
        %v428 = vld [vmem:[%s425 + $0x8] sm:$0xff]
        %429 = vrot.lane.b32.xlu0 %v427, 17
        %v430 = vpop.permute.xlu0 %429
        %431 = vrot.lane.b32.xlu0 %v428, 17
        %v432 = vpop.permute.xlu0 %431
        %v433 = vlaneseq
        %v434 = vand.u32 %v433, 127
        %vm435 = vcmp.lt.s32.totalorder %v434, 17
        %v436 = vsel %vm435, %v430, %v432
        %v437 = vsel %vm435, %v432, %v430
        %v438 = vld [vmem:[%s1] ss:$8 sm:$0x3]
        %v440 = vlaneseq
        %v441 = vshrl.u32 %v440, 7
        %v442 = vsub.s32 0, %v441
        %v443 = vrot.slane %v438, %v442
        %v444 = vlaneseq
        %v445 = vshrl.u32 %v444, 7
        %v446 = vsub.s32 1, %v445
        %v447 = vrot.slane %v438, %v446
        %v450 = vmul.f32 %v437, %v443
        %v451 = vmul.f32 %v436, %v447
        %452 = vst [vmem:[#allocation2] sm:$0xff] %v450
        %453 = vst [vmem:[#allocation2 + $0x8] sm:$0xff] %v451
        %454 = vrot.lane.b32.xlu0 %v427, 16
        %v455 = vpop.permute.xlu0 %454
        %456 = vrot.lane.b32.xlu0 %v428, 16
        %v457 = vpop.permute.xlu0 %456
        %vm458 = vcmp.lt.s32.totalorder %v434, 16
        %v459 = vsel %vm458, %v455, %v457
        %v460 = vsel %vm458, %v457, %v455
        %s461 = scalar_lea.vmem %s1, 1
        %v462 = vld [vmem:[%s461] ss:$8 sm:$0x3]
        %v464 = vlaneseq
        %v465 = vshrl.u32 %v464, 7
        %v466 = vsub.s32 0, %v465
        %v467 = vrot.slane %v462, %v466
        %v468 = vlaneseq
        %v469 = vshrl.u32 %v468, 7
        %v470 = vsub.s32 1, %v469
        %v471 = vrot.slane %v462, %v470
        %v474 = vmul.f32 %v460, %v467
        %v475 = vmul.f32 %v459, %v471
        %476 = vst [vmem:[#allocation2 + $0x10] sm:$0xff] %v474
        %477 = vst [vmem:[#allocation2 + $0x18] sm:$0xff] %v475
        %478 = vrot.lane.b32.xlu0 %v427, 15
        %v479 = vpop.permute.xlu0 %478
        %480 = vrot.lane.b32.xlu0 %v428, 15
        %v481 = vpop.permute.xlu0 %480
        %vm482 = vcmp.lt.s32.totalorder %v434, 15
        %v483 = vsel %vm482, %v479, %v481
        %v484 = vsel %vm482, %v481, %v479
        %s485 = scalar_lea.vmem %s1, 2
        %v486 = vld [vmem:[%s485] ss:$8 sm:$0x3]
        %v488 = vlaneseq
        %v489 = vshrl.u32 %v488, 7
        %v490 = vsub.s32 0, %v489
        %v491 = vrot.slane %v486, %v490
        %v492 = vlaneseq
        %v493 = vshrl.u32 %v492, 7
        %v494 = vsub.s32 1, %v493
        %v495 = vrot.slane %v486, %v494
        %v498 = vmul.f32 %v484, %v491
        %v499 = vmul.f32 %v483, %v495
        %500 = vst [vmem:[#allocation2 + $0x20] sm:$0xff] %v498
        %501 = vst [vmem:[#allocation2 + $0x28] sm:$0xff] %v499
        %502 = vrot.lane.b32.xlu0 %v427, 1
        %v503 = vpop.permute.xlu0 %502
        %504 = vrot.lane.b32.xlu0 %v428, 1
        %v505 = vpop.permute.xlu0 %504
        %vm506 = vcmp.lt.s32.totalorder %v434, 1
        %v507 = vsel %vm506, %v503, %v505
        %v508 = vsel %vm506, %v505, %v503
        %s509 = scalar_lea.vmem %s1, 3
        %v510 = vld [vmem:[%s509] ss:$8 sm:$0x3]
        %v512 = vlaneseq
        %v513 = vshrl.u32 %v512, 7
        %v514 = vsub.s32 0, %v513
        %v515 = vrot.slane %v510, %v514
        %v516 = vlaneseq
        %v517 = vshrl.u32 %v516, 7
        %v518 = vsub.s32 1, %v517
        %v519 = vrot.slane %v510, %v518
        %v522 = vmul.f32 %v508, %v515
        %v523 = vmul.f32 %v507, %v519
        %524 = vst [vmem:[#allocation2 + $0x30] sm:$0xff] %v522
        %525 = vst [vmem:[#allocation2 + $0x38] sm:$0xff] %v523
        %526 = vst [vmem:[#allocation2 + $0x40] sm:$0xff] %v427
        %527 = vst [vmem:[#allocation2 + $0x48] sm:$0xff] %v428
        %528 = vrot.lane.b32.xlu0 %v427, 127
        %v529 = vpop.permute.xlu0 %528
        %530 = vrot.lane.b32.xlu0 %v428, 127
        %v531 = vpop.permute.xlu0 %530
        %vm532 = vcmp.lt.s32.totalorder %v434, 127
        %v533 = vsel %vm532, %v529, %v531
        %v534 = vsel %vm532, %v531, %v529
        %s535 = scalar_lea.vmem %s1, 5
        %v536 = vld [vmem:[%s535] ss:$8 sm:$0x3]
        %v538 = vlaneseq
        %v539 = vshrl.u32 %v538, 7
        %v540 = vsub.s32 0, %v539
        %v541 = vrot.slane %v536, %v540
        %v542 = vlaneseq
        %v543 = vshrl.u32 %v542, 7
        %v544 = vsub.s32 1, %v543
        %v545 = vrot.slane %v536, %v544
        %v548 = vmul.f32 %v533, %v541
        %v549 = vmul.f32 %v534, %v545
        %550 = vst [vmem:[#allocation2 + $0x50] sm:$0xff] %v548
        %551 = vst [vmem:[#allocation2 + $0x58] sm:$0xff] %v549
        %552 = vrot.lane.b32.xlu0 %v427, 113
        %v553 = vpop.permute.xlu0 %552
        %554 = vrot.lane.b32.xlu0 %v428, 113
        %v555 = vpop.permute.xlu0 %554
        %vm556 = vcmp.lt.s32.totalorder %v434, 113
        %v557 = vsel %vm556, %v553, %v555
        %v558 = vsel %vm556, %v555, %v553
        %s559 = scalar_lea.vmem %s1, 6
        %v560 = vld [vmem:[%s559] ss:$8 sm:$0x3]
        %v562 = vlaneseq
        %v563 = vshrl.u32 %v562, 7
        %v564 = vsub.s32 0, %v563
        %v565 = vrot.slane %v560, %v564
        %v566 = vlaneseq
        %v567 = vshrl.u32 %v566, 7
        %v568 = vsub.s32 1, %v567
        %v569 = vrot.slane %v560, %v568
        %v572 = vmul.f32 %v557, %v565
        %v573 = vmul.f32 %v558, %v569
        %574 = vst [vmem:[#allocation2 + $0x60] sm:$0xff] %v572
        %575 = vst [vmem:[#allocation2 + $0x68] sm:$0xff] %v573
        %576 = vrot.lane.b32.xlu0 %v427, 112
        %v577 = vpop.permute.xlu0 %576
        %578 = vrot.lane.b32.xlu0 %v428, 112
        %v579 = vpop.permute.xlu0 %578
        %vm580 = vcmp.lt.s32.totalorder %v434, 112
        %v581 = vsel %vm580, %v577, %v579
        %v582 = vsel %vm580, %v579, %v577
        %s583 = scalar_lea.vmem %s1, 7
        %v584 = vld [vmem:[%s583] ss:$8 sm:$0x3]
        %v586 = vlaneseq
        %v587 = vshrl.u32 %v586, 7
        %v588 = vsub.s32 0, %v587
        %v589 = vrot.slane %v584, %v588
        %v590 = vlaneseq
        %v591 = vshrl.u32 %v590, 7
        %v592 = vsub.s32 1, %v591
        %v593 = vrot.slane %v584, %v592
        %v596 = vmul.f32 %v581, %v589
        %v597 = vmul.f32 %v582, %v593
        %598 = vst [vmem:[#allocation2 + $0x70] sm:$0xff] %v596
        %599 = vst [vmem:[#allocation2 + $0x78] sm:$0xff] %v597
        %600 = vrot.lane.b32.xlu0 %v427, 111
        %v601 = vpop.permute.xlu0 %600
        %602 = vrot.lane.b32.xlu0 %v428, 111
        %v603 = vpop.permute.xlu0 %602
        %vm604 = vcmp.lt.s32.totalorder %v434, 111
        %v605 = vsel %vm604, %v601, %v603
        %v606 = vsel %vm604, %v603, %v601
        %s607 = scalar_lea.vmem %s1, 16
        %v608 = vld [vmem:[%s607] ss:$8 sm:$0x3]
        %v610 = vlaneseq
        %v611 = vshrl.u32 %v610, 7
        %v612 = vsub.s32 0, %v611
        %v613 = vrot.slane %v608, %v612
        %v614 = vlaneseq
        %v615 = vshrl.u32 %v614, 7
        %v616 = vsub.s32 1, %v615
        %v617 = vrot.slane %v608, %v616
        %v620 = vmul.f32 %v605, %v613
        %v621 = vmul.f32 %v606, %v617
        %622 = vst [vmem:[#allocation2 + $0x80] sm:$0xff] %v620
        %623 = vst [vmem:[#allocation2 + $0x88] sm:$0xff] %v621
        %v624 = vld [vmem:[%s2] sm:$0xf]
        %v625 = vld [vmem:[#allocation2] sm:$0xff]
        %v626 = vld [vmem:[#allocation2 + $0x8] sm:$0xff]
        %v627 = vld [vmem:[#allocation2 + $0x10] sm:$0xff]
        %v628 = vld [vmem:[#allocation2 + $0x18] sm:$0xff]
        %v629 = vld [vmem:[#allocation2 + $0x20] sm:$0xff]
        %v630 = vld [vmem:[#allocation2 + $0x28] sm:$0xff]
        %v631 = vld [vmem:[#allocation2 + $0x30] sm:$0xff]
        %v632 = vld [vmem:[#allocation2 + $0x38] sm:$0xff]
        %v633 = vld [vmem:[#allocation2 + $0x40] sm:$0xff]
        %v634 = vld [vmem:[#allocation2 + $0x48] sm:$0xff]
        %v635 = vld [vmem:[#allocation2 + $0x50] sm:$0xff]
        %v636 = vld [vmem:[#allocation2 + $0x58] sm:$0xff]
        %v637 = vld [vmem:[#allocation2 + $0x60] sm:$0xff]
        %v638 = vld [vmem:[#allocation2 + $0x68] sm:$0xff]
        %v639 = vld [vmem:[#allocation2 + $0x70] sm:$0xff]
        %v640 = vld [vmem:[#allocation2 + $0x78] sm:$0xff]
        %v641 = vld [vmem:[#allocation2 + $0x80] sm:$0xff]
        %v642 = vld [vmem:[#allocation2 + $0x88] sm:$0xff]
        %v643 = vpack.c.bf16 %v627, %v625
        %v644 = vpack.c.bf16 %v628, %v626
        %v645 = vpack.c.bf16 %v631, %v629
        %v646 = vpack.c.bf16 %v632, %v630
        %v647 = vpack.c.bf16 %v635, %v633
        %v648 = vpack.c.bf16 %v636, %v634
        %v649 = vpack.c.bf16 %v639, %v637
        %v650 = vpack.c.bf16 %v640, %v638
        %v651 = vpack.c.bf16 %v641, %v641
        %v652 = vpack.c.bf16 %v642, %v642
        %v653 = vld [vmem:[%s3] sm:$0xff]
        %655 = vset.pattern.permute.xlu0 0
        %656 = vperm.xlu0 %655, %v653
        %v657 = vpop.permute.xlu0 %656
        %vm659 = vcmask 588800
        %v661 = vsel %vm659, %v624, 0
        %vm663 = vcmask 1043456
        %v665 = vsel %vm663, %v651, 0
        %v668 = vsel %vm663, %v652, 0
        %670 = vmatprep.subr.bf16.mxu0 %v644
        %671 = vmatpush1.bf16.msra.mxu0 %v643
        %672 = vmatprep.subr.bf16.mxu0 %v646
        %673 = vmatpush1.bf16.msra.mxu0 %v645
        %674 = vmatprep.subr.bf16.mxu0 %v648
        %675 = vmatpush1.bf16.msra.mxu0 %v647
        %676 = vmatprep.subr.bf16.mxu0 %v650
        %677 = vmatpush1.bf16.msra.mxu0 %v649
        %678 = vmatprep.subr.bf16.mxu0 %v668
        %679 = vmatpush1.bf16.msra.mxu0 %v665
        %680 = vmatprep.subr.bf16.mxu0 0
        %681 = vmatpush1.bf16.msra.mxu0 0
        %682 = vmatprep.subr.bf16.mxu0 0
        %683 = vmatpush1.bf16.msra.mxu0 0
        %684 = vmatprep.subr.bf16.mxu0 0
        %685 = vmatpush1.bf16.msra.mxu0 0
        %686 = vmatprep.subr.bf16.mxu0 0
        %687 = vmatpush1.bf16.msra.mxu0 0
        %688 = vmatprep.subr.bf16.mxu0 0
        %689 = vmatpush1.bf16.msra.mxu0 0
        %690 = vmatprep.subr.bf16.mxu0 0
        %691 = vmatpush1.bf16.msra.mxu0 0
        %692 = vmatprep.subr.bf16.mxu0 0
        %693 = vmatpush1.bf16.msra.mxu0 0
        %694 = vmatprep.subr.bf16.mxu0 0
        %695 = vmatpush1.bf16.msra.mxu0 0
        %696 = vmatprep.subr.bf16.mxu0 0
        %697 = vmatpush1.bf16.msra.mxu0 0
        %698 = vmatprep.subr.bf16.mxu0 0
        %699 = vmatpush1.bf16.msra.mxu0 0
        %700 = vmatprep.subr.bf16.mxu0 0
        %701 = vmatpush1.bf16.msra.mxu0 0
        %702 = vmatprep.mubr.bf16.mxu0 0
        %703 = vmatmul.mubr.bf16.gmra.mrb[0].mxu0 %v661
        %v704 = vpop.f32.mrb[0].mxu0
        %v705 = vadd.f32 %v657, %v704
        %v706 = vpop.f32.mrb[0].mxu0
        %v707 = vadd.f32 %v657, %v706
        %v708 = vpop.f32.mrb[0].mxu0
        %v709 = vpop.f32.mrb[0].mxu0
        %710 = vdwg.mxu0
        %v711 = vmax.f32 %v705, 0.0
        %v712 = vmax.f32 %v707, 0.0
        %713 = vrot.lane.b32.xlu0 %v711, 127
        %v714 = vpop.permute.xlu0 %713
        %715 = vrot.lane.b32.xlu0 %v712, 127
        %v716 = vpop.permute.xlu0 %715
        %v717 = vsel %vm532, %v714, %v716
        %v718 = vsel %vm532, %v716, %v714
        %v719 = vmax.f32 %v711, %v717
        %v720 = vmax.f32 %v712, %v718
        %721 = vrot.lane.b32.xlu0 %v719, 112
        %v722 = vpop.permute.xlu0 %721
        %723 = vrot.lane.b32.xlu0 %v720, 112
        %v724 = vpop.permute.xlu0 %723
        %v725 = vsel %vm580, %v722, %v724
        %v726 = vsel %vm580, %v724, %v722
        %v727 = vmax.f32 %v719, %v725
        %v728 = vmax.f32 %v720, %v726
        %v729 = vpack.c.bf16 %v727, %v727
        %v730 = vpack.c.bf16 %v728, %v728
        %v731 = vld [vmem:[%s4] sm:$0xf]
        %v732 = vld [vmem:[%s4 + $0x4] sm:$0xf]
        %v733 = vld [vmem:[%s4 + $0x8] sm:$0xf]
        %v734 = vld [vmem:[%s4 + $0xc] sm:$0xf]
        %v735 = vld [vmem:[%s4 + $0x10] sm:$0xf]
        %v736 = vld [vmem:[%s4 + $0x14] sm:$0xf]
        %v737 = vld [vmem:[%s4 + $0x18] sm:$0xf]
        %v738 = vld [vmem:[%s4 + $0x1c] sm:$0xf]
        %v739 = vld [vmem:[%s4 + $0x20] sm:$0xf]
        %v740 = vld [vmem:[%s4 + $0x24] sm:$0xf]
        %v741 = vld [vmem:[%s4 + $0x28] sm:$0xf]
        %v742 = vld [vmem:[%s4 + $0x2c] sm:$0xf]
        %v743 = vld [vmem:[%s4 + $0x30] sm:$0xf]
        %v744 = vld [vmem:[%s4 + $0x34] sm:$0xf]
        %v745 = vld [vmem:[%s4 + $0x38] sm:$0xf]
        %v746 = vld [vmem:[%s4 + $0x3c] sm:$0xf]
        %v747 = vld [vmem:[%s4 + $0x40] sm:$0xf]
        %v748 = vld [vmem:[%s4 + $0x44] sm:$0xf]
        %v749 = vld [vmem:[%s4 + $0x48] sm:$0xf]
        %v750 = vld [vmem:[%s4 + $0x4c] sm:$0xf]
        %v751 = vld [vmem:[%s4 + $0x50] sm:$0xf]
        %v752 = vld [vmem:[%s4 + $0x54] sm:$0xf]
        %v753 = vld [vmem:[%s4 + $0x58] sm:$0xf]
        %v754 = vld [vmem:[%s4 + $0x5c] sm:$0xf]
        %v755 = vld [vmem:[%s4 + $0x60] sm:$0xf]
        %v756 = vld [vmem:[%s4 + $0x64] sm:$0xf]
        %v757 = vld [vmem:[%s4 + $0x68] sm:$0xf]
        %v758 = vld [vmem:[%s4 + $0x6c] sm:$0xf]
        %v759 = vld [vmem:[%s4 + $0x70] sm:$0xf]
        %v760 = vld [vmem:[%s4 + $0x74] sm:$0xf]
        %v761 = vld [vmem:[%s4 + $0x78] sm:$0xf]
        %v762 = vld [vmem:[%s4 + $0x7c] sm:$0xf]
        %v795 = vunpack.c.l.b16 %v731
        %v796 = vunpack.c.l.b16 %v732
        %v797 = vunpack.c.l.b16 %v733
        %v798 = vunpack.c.l.b16 %v734
        %v799 = vunpack.c.l.b16 %v735
        %v800 = vunpack.c.l.b16 %v736
        %v801 = vunpack.c.l.b16 %v737
        %v802 = vunpack.c.l.b16 %v738
        %v803 = vunpack.c.l.b16 %v739
        %v804 = vunpack.c.l.b16 %v740
        %v805 = vunpack.c.l.b16 %v741
        %v806 = vunpack.c.l.b16 %v742
        %v807 = vunpack.c.l.b16 %v743
        %v808 = vunpack.c.l.b16 %v744
        %v809 = vunpack.c.l.b16 %v745
        %v810 = vunpack.c.l.b16 %v746
        %v811 = vunpack.c.l.b16 %v747
        %v812 = vunpack.c.l.b16 %v748
        %v813 = vunpack.c.l.b16 %v749
        %v814 = vunpack.c.l.b16 %v750
        %v815 = vunpack.c.l.b16 %v751
        %v816 = vunpack.c.l.b16 %v752
        %v817 = vunpack.c.l.b16 %v753
        %v818 = vunpack.c.l.b16 %v754
        %v819 = vunpack.c.l.b16 %v755
        %v820 = vunpack.c.l.b16 %v756
        %v821 = vunpack.c.l.b16 %v757
        %v822 = vunpack.c.l.b16 %v758
        %v823 = vunpack.c.l.b16 %v759
        %v824 = vunpack.c.l.b16 %v760
        %v825 = vunpack.c.l.b16 %v761
        %v826 = vunpack.c.l.b16 %v762
        %v827 = vpack.c.b16 %v796, %v795
        %v828 = vpack.c.b16 %v798, %v797
        %v829 = vpack.c.b16 %v800, %v799
        %v830 = vpack.c.b16 %v802, %v801
        %v831 = vpack.c.b16 %v804, %v803
        %v832 = vpack.c.b16 %v806, %v805
        %v833 = vpack.c.b16 %v808, %v807
        %v834 = vpack.c.b16 %v810, %v809
        %v835 = vpack.c.b16 %v812, %v811
        %v836 = vpack.c.b16 %v814, %v813
        %v837 = vpack.c.b16 %v816, %v815
        %v838 = vpack.c.b16 %v818, %v817
        %v839 = vpack.c.b16 %v820, %v819
        %v840 = vpack.c.b16 %v822, %v821
        %v841 = vpack.c.b16 %v824, %v823
        %v842 = vpack.c.b16 %v826, %v825
        %859 = vmatprep.subr.bf16.mxu0 0
        %860 = vmatpush1.bf16.msra.mxu0 %v827
        %861 = vmatprep.subr.bf16.mxu0 0
        %862 = vmatpush1.bf16.msra.mxu0 %v828
        %863 = vmatprep.subr.bf16.mxu0 0
        %864 = vmatpush1.bf16.msra.mxu0 %v829
        %865 = vmatprep.subr.bf16.mxu0 0
        %866 = vmatpush1.bf16.msra.mxu0 %v830
        %867 = vmatprep.subr.bf16.mxu0 0
        %868 = vmatpush1.bf16.msra.mxu0 %v831
        %869 = vmatprep.subr.bf16.mxu0 0
        %870 = vmatpush1.bf16.msra.mxu0 %v832
        %871 = vmatprep.subr.bf16.mxu0 0
        %872 = vmatpush1.bf16.msra.mxu0 %v833
        %873 = vmatprep.subr.bf16.mxu0 0
        %874 = vmatpush1.bf16.msra.mxu0 %v834
        %875 = vmatprep.subr.bf16.mxu0 0
        %876 = vmatpush1.bf16.msra.mxu0 %v835
        %877 = vmatprep.subr.bf16.mxu0 0
        %878 = vmatpush1.bf16.msra.mxu0 %v836
        %879 = vmatprep.subr.bf16.mxu0 0
        %880 = vmatpush1.bf16.msra.mxu0 %v837
        %881 = vmatprep.subr.bf16.mxu0 0
        %882 = vmatpush1.bf16.msra.mxu0 %v838
        %883 = vmatprep.subr.bf16.mxu0 0
        %884 = vmatpush1.bf16.msra.mxu0 %v839
        %885 = vmatprep.subr.bf16.mxu0 0
        %886 = vmatpush1.bf16.msra.mxu0 %v840
        %887 = vmatprep.subr.bf16.mxu0 0
        %888 = vmatpush1.bf16.msra.mxu0 %v841
        %889 = vmatprep.subr.bf16.mxu0 0
        %890 = vmatpush1.bf16.msra.mxu0 %v842
        %891 = vmatprep.mubr.bf16.mxu0 %v730
        %892 = vmatmul.mubr.bf16.gmra.mrb[0].mxu0 %v729
        %v893 = vpop.f32.mrb[0].mxu0
        %v894 = vadd.f32 0.0, %v893
        %v895 = vpop.f32.mrb[0].mxu0
        %v896 = vpop.f32.mrb[0].mxu0
        %v897 = vpop.f32.mrb[0].mxu0
        %898 = vdwg.mxu0
        %vm899 = vcmask 1048064
        %900 = vrot.lane.b32.xlu0 %v894, 64
        %v901 = vpop.permute.xlu0 %900
        %v902 = vsel %vm899, %v901, %v894
        %903 = vrot.lane.b32.xlu0 %v902, 64
        %v904 = vpop.permute.xlu0 %903
        %v905 = vsel %vm899, %v904, %v894
        %v906 = vld [vmem:[%s5] sm:$0x1]
        %v907 = vlaneseq
        %v908 = vshrl.u32 %v907, 7
        %v909 = vsub.s32 0, %v908
        %v910 = vrot.slane %v906, %v909
        %912 = vrot.lane.b32.xlu0 %v910, 55
        %v913 = vpop.permute.xlu0 %912
        %v915 = vmul.f32 %v905, %v913
        %917 = vrot.lane.b32.xlu0 %v915, 73
        %v918 = vpop.permute.xlu0 %917
        %vm920 = vcmask 523264
        %921 = vst.msk [vmem:[#allocation3] sm:$0xff] %vm920, %v918
        %v922 = vld [vmem:[%s5 + $0x1] sm:$0x1]
        %v923 = vlaneseq
        %v924 = vshrl.u32 %v923, 7
        %v925 = vsub.s32 0, %v924
        %v926 = vrot.slane %v922, %v925
        %928 = vrot.lane.b32.xlu0 %v926, 56
        %v929 = vpop.permute.xlu0 %928
        %v931 = vmul.f32 %v905, %v929
        %933 = vrot.lane.b32.xlu0 %v931, 72
        %v934 = vpop.permute.xlu0 %933
        %936 = vst.msk [vmem:[#allocation3 + $0x8] sm:$0xff] %vm920, %v934
        %v937 = vld [vmem:[%s5 + $0x2] sm:$0x1]
        %v938 = vlaneseq
        %v939 = vshrl.u32 %v938, 7
        %v940 = vsub.s32 0, %v939
        %v941 = vrot.slane %v937, %v940
        %943 = vrot.lane.b32.xlu0 %v941, 57
        %v944 = vpop.permute.xlu0 %943
        %v946 = vmul.f32 %v905, %v944
        %948 = vrot.lane.b32.xlu0 %v946, 71
        %v949 = vpop.permute.xlu0 %948
        %951 = vst.msk [vmem:[#allocation3 + $0x10] sm:$0xff] %vm920, %v949
        %v952 = vld [vmem:[%s5 + $0x3] sm:$0x1]
        %v953 = vlaneseq
        %v954 = vshrl.u32 %v953, 7
        %v955 = vsub.s32 0, %v954
        %v956 = vrot.slane %v952, %v955
        %958 = vrot.lane.b32.xlu0 %v956, 63
        %v959 = vpop.permute.xlu0 %958
        %v961 = vmul.f32 %v905, %v959
        %963 = vrot.lane.b32.xlu0 %v961, 65
        %v964 = vpop.permute.xlu0 %963
        %966 = vst.msk [vmem:[#allocation3 + $0x18] sm:$0xff] %vm920, %v964
        %967 = vst.msk [vmem:[#allocation3 + $0x20] sm:$0xff] %vm920, %v894
        %v968 = vld [vmem:[%s5 + $0x5] sm:$0x1]
        %v969 = vlaneseq
        %v970 = vshrl.u32 %v969, 7
        %v971 = vsub.s32 0, %v970
        %v972 = vrot.slane %v968, %v971
        %974 = vrot.lane.b32.xlu0 %v972, 1
        %v975 = vpop.permute.xlu0 %974
        %v977 = vmul.f32 %v905, %v975
        %979 = vrot.lane.b32.xlu0 %v977, 127
        %v980 = vpop.permute.xlu0 %979
        %982 = vst.msk [vmem:[#allocation3 + $0x28] sm:$0xff] %vm920, %v980
        %v983 = vld [vmem:[%s5 + $0x6] sm:$0x1]
        %v984 = vlaneseq
        %v985 = vshrl.u32 %v984, 7
        %v986 = vsub.s32 0, %v985
        %v987 = vrot.slane %v983, %v986
        %989 = vrot.lane.b32.xlu0 %v987, 7
        %v990 = vpop.permute.xlu0 %989
        %v992 = vmul.f32 %v905, %v990
        %994 = vrot.lane.b32.xlu0 %v992, 121
        %v995 = vpop.permute.xlu0 %994
        %997 = vst.msk [vmem:[#allocation3 + $0x30] sm:$0xff] %vm920, %v995
        %v998 = vld [vmem:[%s5 + $0x7] sm:$0x1]
        %v999 = vlaneseq
        %v1000 = vshrl.u32 %v999, 7
        %v1001 = vsub.s32 0, %v1000
        %v1002 = vrot.slane %v998, %v1001
        %1004 = vrot.lane.b32.xlu0 %v1002, 8
        %v1005 = vpop.permute.xlu0 %1004
        %v1007 = vmul.f32 %v905, %v1005
        %1009 = vrot.lane.b32.xlu0 %v1007, 120
        %v1010 = vpop.permute.xlu0 %1009
        %1012 = vst.msk [vmem:[#allocation3 + $0x38] sm:$0xff] %vm920, %v1010
        %v1013 = vld [vmem:[%s5 + $0x8] sm:$0x1]
        %v1014 = vlaneseq
        %v1015 = vshrl.u32 %v1014, 7
        %v1016 = vsub.s32 0, %v1015
        %v1017 = vrot.slane %v1013, %v1016
        %1019 = vrot.lane.b32.xlu0 %v1017, 9
        %v1020 = vpop.permute.xlu0 %1019
        %v1022 = vmul.f32 %v905, %v1020
        %1024 = vrot.lane.b32.xlu0 %v1022, 119
        %v1025 = vpop.permute.xlu0 %1024
        %1027 = vst.msk [vmem:[#allocation3 + $0x40] sm:$0xff] %vm920, %v1025
        %v1028 = vld [vmem:[%s6] sm:$0xf]
        %v1029 = vld [vmem:[#allocation3] sm:$0xff]
        %v1030 = vld [vmem:[#allocation3 + $0x8] sm:$0xff]
        %v1031 = vld [vmem:[#allocation3 + $0x10] sm:$0xff]
        %v1032 = vld [vmem:[#allocation3 + $0x18] sm:$0xff]
        %v1033 = vld [vmem:[#allocation3 + $0x20] sm:$0xff]
        %v1034 = vld [vmem:[#allocation3 + $0x28] sm:$0xff]
        %v1035 = vld [vmem:[#allocation3 + $0x30] sm:$0xff]
        %v1036 = vld [vmem:[#allocation3 + $0x38] sm:$0xff]
        %v1037 = vld [vmem:[#allocation3 + $0x40] sm:$0xff]
        %v1038 = vpack.c.bf16 %v1030, %v1029
        %v1039 = vpack.c.bf16 %v1032, %v1031
        %v1040 = vpack.c.bf16 %v1034, %v1033
        %v1041 = vpack.c.bf16 %v1036, %v1035
        %v1042 = vpack.c.bf16 %v1037, %v1037
        %v1043 = vld [vmem:[%s7] sm:$0xff]
        %1045 = vset.pattern.permute.xlu0 0
        %1046 = vperm.xlu0 %1045, %v1043
        %v1047 = vpop.permute.xlu0 %1046
        %v1050 = vsel %vm659, %v1028, 0
        %v1053 = vsel %vm663, %v1042, 0
        %1055 = vmatprep.subr.bf16.mxu0 0
        %1056 = vmatpush1.bf16.msra.mxu0 %v1038
        %1057 = vmatprep.subr.bf16.mxu0 0
        %1058 = vmatpush1.bf16.msra.mxu0 %v1039
        %1059 = vmatprep.subr.bf16.mxu0 0
        %1060 = vmatpush1.bf16.msra.mxu0 %v1040
        %1061 = vmatprep.subr.bf16.mxu0 0
        %1062 = vmatpush1.bf16.msra.mxu0 %v1041
        %1063 = vmatprep.subr.bf16.mxu0 0
        %1064 = vmatpush1.bf16.msra.mxu0 %v1053
        %1065 = vmatprep.subr.bf16.mxu0 0
        %1066 = vmatpush1.bf16.msra.mxu0 0
        %1067 = vmatprep.subr.bf16.mxu0 0
        %1068 = vmatpush1.bf16.msra.mxu0 0
        %1069 = vmatprep.subr.bf16.mxu0 0
        %1070 = vmatpush1.bf16.msra.mxu0 0
        %1071 = vmatprep.subr.bf16.mxu0 0
        %1072 = vmatpush1.bf16.msra.mxu0 0
        %1073 = vmatprep.subr.bf16.mxu0 0
        %1074 = vmatpush1.bf16.msra.mxu0 0
        %1075 = vmatprep.subr.bf16.mxu0 0
        %1076 = vmatpush1.bf16.msra.mxu0 0
        %1077 = vmatprep.subr.bf16.mxu0 0
        %1078 = vmatpush1.bf16.msra.mxu0 0
        %1079 = vmatprep.subr.bf16.mxu0 0
        %1080 = vmatpush1.bf16.msra.mxu0 0
        %1081 = vmatprep.subr.bf16.mxu0 0
        %1082 = vmatpush1.bf16.msra.mxu0 0
        %1083 = vmatprep.subr.bf16.mxu0 0
        %1084 = vmatpush1.bf16.msra.mxu0 0
        %1085 = vmatprep.subr.bf16.mxu0 0
        %1086 = vmatpush1.bf16.msra.mxu0 0
        %1087 = vmatprep.mubr.bf16.mxu0 0
        %1088 = vmatmul.mubr.bf16.gmra.mrb[0].mxu0 %v1050
        %v1089 = vpop.f32.mrb[0].mxu0
        %v1090 = vadd.f32 %v1047, %v1089
        %v1091 = vpop.f32.mrb[0].mxu0
        %v1092 = vpop.f32.mrb[0].mxu0
        %v1093 = vpop.f32.mrb[0].mxu0
        %1094 = vdwg.mxu0
        %vm1095 = vcmp.ge.f32.partialorder %v1090, 0.0
        %v1096 = vmul.f32 %v1090, 0.1
        %v1097 = vsel %vm1095, %v1090, %v1096
        %v1098 = vlaneseq
        %vm1099 = vcmp.ge.s32.totalorder %v1098, 0
        %vm1100 = vcmp.lt.s32.totalorder %v1098, 64
        %vm1101 = vmand %vm1099, %vm1100
        %1102 = vst.msk [vmem:[#allocation4] sm:$0x1] %vm1101, %v1097
        %v1105 = vunpack.c.l.s4 1966171168
        %v1106 = vunpack.c.0.s8 %v1105
        %v1107 = vlaneseq
        %v1108 = vshrl.u32 %v1107, 7
        %v1109 = vsub.s32 %v1106, %v1108
        %v1110 = vrot.slane %v1097, %v1109
        %v1111 = vcombine.high %v1110, %v1110
        %v1113 = vunpack.c.l.s4 1966171168
        %v1114 = vunpack.c.0.s8 %v1113
        %v1115 = vlaneseq
        %v1116 = vshrl.u32 %v1115, 7
        %v1117 = vsub.s32 %v1114, %v1116
        %v1118 = vrot.slane %v1110, %v1117
        %v1120 = vunpack.c.l.s4 1966171168
        %v1121 = vunpack.c.0.s8 %v1120
        %v1122 = vlaneseq
        %v1123 = vshrl.u32 %v1122, 7
        %v1124 = vsub.s32 %v1121, %v1123
        %v1125 = vrot.slane %v1111, %v1124
        %1126 = vrot.lane.b32.xlu0 %v1125, 64
        %v1127 = vpop.permute.xlu0 %1126
        %vm1129 = vcmp.ge.s32.totalorder %v1098, 64
        %vm1130 = vcmp.lt.s32.totalorder %v1098, 128
        %vm1131 = vmand %vm1129, %vm1130
        %1132 = vst.msk [vmem:[#allocation4] sm:$0x1] %vm1131, %v1127
        %v1133 = vcombine.high %v1118, %v1118
        %1135 = vst.msk [vmem:[#allocation4 + $0x1] sm:$0x1] %vm1101, %v1133
        %v1136 = vcombine.high %v1125, %v1125
        %1137 = vrot.lane.b32.xlu0 %v1136, 64
        %v1138 = vpop.permute.xlu0 %1137
        %1140 = vst.msk [vmem:[#allocation4 + $0x1] sm:$0x1] %vm1131, %v1138
        %v1141 = vcombine.high %v1097, %v1097
        %v1143 = vunpack.c.l.s4 1966171168
        %v1144 = vunpack.c.0.s8 %v1143
        %v1145 = vlaneseq
        %v1146 = vshrl.u32 %v1145, 7
        %v1147 = vsub.s32 %v1144, %v1146
        %v1148 = vrot.slane %v1141, %v1147
        %v1150 = vunpack.c.l.s4 1966171168
        %v1151 = vunpack.c.0.s8 %v1150
        %v1152 = vlaneseq
        %v1153 = vshrl.u32 %v1152, 7
        %v1154 = vsub.s32 %v1151, %v1153
        %v1155 = vrot.slane %v1148, %v1154
        %1157 = vst.msk [vmem:[#allocation4 + $0x2] sm:$0x1] %vm1101, %v1155
        %v1158 = vcombine.high %v1148, %v1148
        %v1160 = vunpack.c.l.s4 1966171168
        %v1161 = vunpack.c.0.s8 %v1160
        %v1162 = vlaneseq
        %v1163 = vshrl.u32 %v1162, 7
        %v1164 = vsub.s32 %v1161, %v1163
        %v1165 = vrot.slane %v1158, %v1164
        %1166 = vrot.lane.b32.xlu0 %v1165, 64
        %v1167 = vpop.permute.xlu0 %1166
        %1169 = vst.msk [vmem:[#allocation4 + $0x2] sm:$0x1] %vm1131, %v1167
        %v1170 = vcombine.high %v1155, %v1155
        %1172 = vst.msk [vmem:[#allocation4 + $0x3] sm:$0x1] %vm1101, %v1170
        %v1173 = vcombine.high %v1165, %v1165
        %1174 = vrot.lane.b32.xlu0 %v1173, 64
        %v1175 = vpop.permute.xlu0 %1174
        %1177 = vst.msk [vmem:[#allocation4 + $0x3] sm:$0x1] %vm1131, %v1175
        %v1178 = vld [vmem:[#allocation4] sm:$0xf]
        %v1180 = vlaneseq
        %v1181 = vshrl.u32 %v1180, 7
        %v1182 = vsub.s32 0, %v1181
        %v1183 = vrot.slane %v1178, %v1182
        %v1184 = vlaneseq
        %v1185 = vshrl.u32 %v1184, 7
        %v1186 = vsub.s32 1, %v1185
        %v1187 = vrot.slane %v1178, %v1186
        %v1188 = vlaneseq
        %v1189 = vshrl.u32 %v1188, 7
        %v1190 = vsub.s32 2, %v1189
        %v1191 = vrot.slane %v1178, %v1190
        %v1192 = vlaneseq
        %v1193 = vshrl.u32 %v1192, 7
        %v1194 = vsub.s32 3, %v1193
        %v1195 = vrot.slane %v1178, %v1194
        %v1200 = vpack.c.bf16 %v1183, %v1183
        %v1201 = vpack.c.bf16 %v1187, %v1187
        %v1202 = vpack.c.bf16 %v1191, %v1191
        %v1203 = vpack.c.bf16 %v1195, %v1195
        %v1204 = vld [vmem:[#allocation5] sm:$0xf]
        %v1205 = vld [vmem:[#allocation5 + $0x4] sm:$0xf]
        %v1206 = vld [vmem:[#allocation5 + $0x8] sm:$0xf]
        %v1207 = vld [vmem:[#allocation5 + $0xc] sm:$0xf]
        %v1208 = vld [vmem:[#allocation5 + $0x10] sm:$0xf]
        %v1209 = vld [vmem:[#allocation5 + $0x14] sm:$0xf]
        %v1210 = vld [vmem:[#allocation5 + $0x18] sm:$0xf]
        %v1211 = vld [vmem:[#allocation5 + $0x1c] sm:$0xf]
        %v1212 = vld [vmem:[#allocation5 + $0x20] sm:$0xf]
        %v1213 = vld [vmem:[#allocation5 + $0x24] sm:$0xf]
        %v1214 = vld [vmem:[#allocation5 + $0x28] sm:$0xf]
        %v1215 = vld [vmem:[#allocation5 + $0x2c] sm:$0xf]
        %v1216 = vld [vmem:[#allocation5 + $0x30] sm:$0xf]
        %v1217 = vld [vmem:[#allocation5 + $0x34] sm:$0xf]
        %v1218 = vld [vmem:[#allocation5 + $0x38] sm:$0xf]
        %v1219 = vld [vmem:[#allocation5 + $0x3c] sm:$0xf]
        %v1220 = vld [vmem:[#allocation5 + $0x40] sm:$0xf]
        %v1221 = vld [vmem:[#allocation5 + $0x44] sm:$0xf]
        %v1222 = vld [vmem:[#allocation5 + $0x48] sm:$0xf]
        %v1223 = vld [vmem:[#allocation5 + $0x4c] sm:$0xf]
        %v1224 = vld [vmem:[#allocation5 + $0x50] sm:$0xf]
        %v1225 = vld [vmem:[#allocation5 + $0x54] sm:$0xf]
        %v1226 = vld [vmem:[#allocation5 + $0x58] sm:$0xf]
        %v1227 = vld [vmem:[#allocation5 + $0x5c] sm:$0xf]
        %v1228 = vld [vmem:[#allocation5 + $0x60] sm:$0xf]
        %v1229 = vld [vmem:[#allocation5 + $0x64] sm:$0xf]
        %v1230 = vld [vmem:[#allocation5 + $0x68] sm:$0xf]
        %v1231 = vld [vmem:[#allocation5 + $0x6c] sm:$0xf]
        %v1232 = vld [vmem:[#allocation5 + $0x70] sm:$0xf]
        %v1233 = vld [vmem:[#allocation5 + $0x74] sm:$0xf]
        %v1234 = vld [vmem:[#allocation5 + $0x78] sm:$0xf]
        %v1235 = vld [vmem:[#allocation5 + $0x7c] sm:$0xf]
        %v1236 = vld [vmem:[#allocation5 + $0x80] sm:$0xf]
        %v1237 = vld [vmem:[#allocation5 + $0x84] sm:$0xf]
        %v1238 = vld [vmem:[#allocation5 + $0x88] sm:$0xf]
        %v1239 = vld [vmem:[#allocation5 + $0x8c] sm:$0xf]
        %v1240 = vld [vmem:[#allocation5 + $0x90] sm:$0xf]
        %v1241 = vld [vmem:[#allocation5 + $0x94] sm:$0xf]
        %v1242 = vld [vmem:[#allocation5 + $0x98] sm:$0xf]
        %v1243 = vld [vmem:[#allocation5 + $0x9c] sm:$0xf]
        %v1244 = vld [vmem:[#allocation5 + $0xa0] sm:$0xf]
        %v1245 = vld [vmem:[#allocation5 + $0xa4] sm:$0xf]
        %v1246 = vld [vmem:[#allocation5 + $0xa8] sm:$0xf]
        %v1247 = vld [vmem:[#allocation5 + $0xac] sm:$0xf]
        %v1248 = vld [vmem:[#allocation5 + $0xb0] sm:$0xf]
        %v1249 = vld [vmem:[#allocation5 + $0xb4] sm:$0xf]
        %v1250 = vld [vmem:[#allocation5 + $0xb8] sm:$0xf]
        %v1251 = vld [vmem:[#allocation5 + $0xbc] sm:$0xf]
        %v1252 = vld [vmem:[#allocation5 + $0xc0] sm:$0xf]
        %v1253 = vld [vmem:[#allocation5 + $0xc4] sm:$0xf]
        %v1254 = vld [vmem:[#allocation5 + $0xc8] sm:$0xf]
        %v1255 = vld [vmem:[#allocation5 + $0xcc] sm:$0xf]
        %v1256 = vld [vmem:[#allocation5 + $0xd0] sm:$0xf]
        %v1257 = vld [vmem:[#allocation5 + $0xd4] sm:$0xf]
        %v1258 = vld [vmem:[#allocation5 + $0xd8] sm:$0xf]
        %v1259 = vld [vmem:[#allocation5 + $0xdc] sm:$0xf]
        %v1260 = vld [vmem:[#allocation5 + $0xe0] sm:$0xf]
        %v1261 = vld [vmem:[#allocation5 + $0xe4] sm:$0xf]
        %v1262 = vld [vmem:[#allocation5 + $0xe8] sm:$0xf]
        %v1263 = vld [vmem:[#allocation5 + $0xec] sm:$0xf]
        %v1264 = vld [vmem:[#allocation5 + $0xf0] sm:$0xf]
        %v1265 = vld [vmem:[#allocation5 + $0xf4] sm:$0xf]
        %v1266 = vld [vmem:[#allocation5 + $0xf8] sm:$0xf]
        %v1267 = vld [vmem:[#allocation5 + $0xfc] sm:$0xf]
        %v1268 = vld [vmem:[%s9] sm:$0x1]
        %v1333 = vunpack.c.l.b16 %v1204
        %v1334 = vunpack.c.l.b16 %v1205
        %v1335 = vunpack.c.l.b16 %v1206
        %v1336 = vunpack.c.l.b16 %v1207
        %v1337 = vunpack.c.l.b16 %v1208
        %v1338 = vunpack.c.l.b16 %v1209
        %v1339 = vunpack.c.l.b16 %v1210
        %v1340 = vunpack.c.l.b16 %v1211
        %v1341 = vunpack.c.l.b16 %v1212
        %v1342 = vunpack.c.l.b16 %v1213
        %v1343 = vunpack.c.l.b16 %v1214
        %v1344 = vunpack.c.l.b16 %v1215
        %v1345 = vunpack.c.l.b16 %v1216
        %v1346 = vunpack.c.l.b16 %v1217
        %v1347 = vunpack.c.l.b16 %v1218
        %v1348 = vunpack.c.l.b16 %v1219
        %v1349 = vunpack.c.l.b16 %v1220
        %v1350 = vunpack.c.l.b16 %v1221
        %v1351 = vunpack.c.l.b16 %v1222
        %v1352 = vunpack.c.l.b16 %v1223
        %v1353 = vunpack.c.l.b16 %v1224
        %v1354 = vunpack.c.l.b16 %v1225
        %v1355 = vunpack.c.l.b16 %v1226
        %v1356 = vunpack.c.l.b16 %v1227
        %v1357 = vunpack.c.l.b16 %v1228
        %v1358 = vunpack.c.l.b16 %v1229
        %v1359 = vunpack.c.l.b16 %v1230
        %v1360 = vunpack.c.l.b16 %v1231
        %v1361 = vunpack.c.l.b16 %v1232
        %v1362 = vunpack.c.l.b16 %v1233
        %v1363 = vunpack.c.l.b16 %v1234
        %v1364 = vunpack.c.l.b16 %v1235
        %v1365 = vunpack.c.l.b16 %v1236
        %v1366 = vunpack.c.l.b16 %v1237
        %v1367 = vunpack.c.l.b16 %v1238
        %v1368 = vunpack.c.l.b16 %v1239
        %v1369 = vunpack.c.l.b16 %v1240
        %v1370 = vunpack.c.l.b16 %v1241
        %v1371 = vunpack.c.l.b16 %v1242
        %v1372 = vunpack.c.l.b16 %v1243
        %v1373 = vunpack.c.l.b16 %v1244
        %v1374 = vunpack.c.l.b16 %v1245
        %v1375 = vunpack.c.l.b16 %v1246
        %v1376 = vunpack.c.l.b16 %v1247
        %v1377 = vunpack.c.l.b16 %v1248
        %v1378 = vunpack.c.l.b16 %v1249
        %v1379 = vunpack.c.l.b16 %v1250
        %v1380 = vunpack.c.l.b16 %v1251
        %v1381 = vunpack.c.l.b16 %v1252
        %v1382 = vunpack.c.l.b16 %v1253
        %v1383 = vunpack.c.l.b16 %v1254
        %v1384 = vunpack.c.l.b16 %v1255
        %v1385 = vunpack.c.l.b16 %v1256
        %v1386 = vunpack.c.l.b16 %v1257
        %v1387 = vunpack.c.l.b16 %v1258
        %v1388 = vunpack.c.l.b16 %v1259
        %v1389 = vunpack.c.l.b16 %v1260
        %v1390 = vunpack.c.l.b16 %v1261
        %v1391 = vunpack.c.l.b16 %v1262
        %v1392 = vunpack.c.l.b16 %v1263
        %v1393 = vunpack.c.l.b16 %v1264
        %v1394 = vunpack.c.l.b16 %v1265
        %v1395 = vunpack.c.l.b16 %v1266
        %v1396 = vunpack.c.l.b16 %v1267
        %v1397 = vpack.c.b16 %v1334, %v1333
        %v1398 = vpack.c.b16 %v1336, %v1335
        %v1399 = vpack.c.b16 %v1338, %v1337
        %v1400 = vpack.c.b16 %v1340, %v1339
        %v1401 = vpack.c.b16 %v1342, %v1341
        %v1402 = vpack.c.b16 %v1344, %v1343
        %v1403 = vpack.c.b16 %v1346, %v1345
        %v1404 = vpack.c.b16 %v1348, %v1347
        %v1405 = vpack.c.b16 %v1350, %v1349
        %v1406 = vpack.c.b16 %v1352, %v1351
        %v1407 = vpack.c.b16 %v1354, %v1353
        %v1408 = vpack.c.b16 %v1356, %v1355
        %v1409 = vpack.c.b16 %v1358, %v1357
        %v1410 = vpack.c.b16 %v1360, %v1359
        %v1411 = vpack.c.b16 %v1362, %v1361
        %v1412 = vpack.c.b16 %v1364, %v1363
        %v1413 = vpack.c.b16 %v1366, %v1365
        %v1414 = vpack.c.b16 %v1368, %v1367
        %v1415 = vpack.c.b16 %v1370, %v1369
        %v1416 = vpack.c.b16 %v1372, %v1371
        %v1417 = vpack.c.b16 %v1374, %v1373
        %v1418 = vpack.c.b16 %v1376, %v1375
        %v1419 = vpack.c.b16 %v1378, %v1377
        %v1420 = vpack.c.b16 %v1380, %v1379
        %v1421 = vpack.c.b16 %v1382, %v1381
        %v1422 = vpack.c.b16 %v1384, %v1383
        %v1423 = vpack.c.b16 %v1386, %v1385
        %v1424 = vpack.c.b16 %v1388, %v1387
        %v1425 = vpack.c.b16 %v1390, %v1389
        %v1426 = vpack.c.b16 %v1392, %v1391
        %v1427 = vpack.c.b16 %v1394, %v1393
        %v1428 = vpack.c.b16 %v1396, %v1395
        %1461 = vmatprep.subr.bf16.mxu0 0
        %1462 = vmatpush1.bf16.msra.mxu0 %v1397
        %1463 = vmatprep.subr.bf16.mxu0 0
        %1464 = vmatpush1.bf16.msra.mxu0 %v1398
        %1465 = vmatprep.subr.bf16.mxu0 0
        %1466 = vmatpush1.bf16.msra.mxu0 %v1399
        %1467 = vmatprep.subr.bf16.mxu0 0
        %1468 = vmatpush1.bf16.msra.mxu0 %v1400
        %1469 = vmatprep.subr.bf16.mxu0 0
        %1470 = vmatpush1.bf16.msra.mxu0 %v1401
        %1471 = vmatprep.subr.bf16.mxu0 0
        %1472 = vmatpush1.bf16.msra.mxu0 %v1402
        %1473 = vmatprep.subr.bf16.mxu0 0
        %1474 = vmatpush1.bf16.msra.mxu0 %v1403
        %1475 = vmatprep.subr.bf16.mxu0 0
        %1476 = vmatpush1.bf16.msra.mxu0 %v1404
        %1477 = vmatprep.subr.bf16.mxu0 0
        %1478 = vmatpush1.bf16.msra.mxu0 %v1405
        %1479 = vmatprep.subr.bf16.mxu0 0
        %1480 = vmatpush1.bf16.msra.mxu0 %v1406
        %1481 = vmatprep.subr.bf16.mxu0 0
        %1482 = vmatpush1.bf16.msra.mxu0 %v1407
        %1483 = vmatprep.subr.bf16.mxu0 0
        %1484 = vmatpush1.bf16.msra.mxu0 %v1408
        %1485 = vmatprep.subr.bf16.mxu0 0
        %1486 = vmatpush1.bf16.msra.mxu0 %v1409
        %1487 = vmatprep.subr.bf16.mxu0 0
        %1488 = vmatpush1.bf16.msra.mxu0 %v1410
        %1489 = vmatprep.subr.bf16.mxu0 0
        %1490 = vmatpush1.bf16.msra.mxu0 %v1411
        %1491 = vmatprep.subr.bf16.mxu0 0
        %1492 = vmatpush1.bf16.msra.mxu0 %v1412
        %1493 = vmatprep.mubr.bf16.mxu0 %v1201
        %1494 = vmatmul.mubr.bf16.gmra.mrb[0].mxu0 %v1200
        %v1495 = vpop.f32.mrb[0].mxu0
        %v1496 = vadd.f32 %v1268, %v1495
        %v1497 = vpop.f32.mrb[0].mxu0
        %v1498 = vpop.f32.mrb[0].mxu0
        %v1499 = vpop.f32.mrb[0].mxu0
        %1500 = vdwg.mxu0
        %1501 = vmatprep.subr.bf16.mxu0 0
        %1502 = vmatpush1.bf16.msra.mxu0 %v1413
        %1503 = vmatprep.subr.bf16.mxu0 0
        %1504 = vmatpush1.bf16.msra.mxu0 %v1414
        %1505 = vmatprep.subr.bf16.mxu0 0
        %1506 = vmatpush1.bf16.msra.mxu0 %v1415
        %1507 = vmatprep.subr.bf16.mxu0 0
        %1508 = vmatpush1.bf16.msra.mxu0 %v1416
        %1509 = vmatprep.subr.bf16.mxu0 0
        %1510 = vmatpush1.bf16.msra.mxu0 %v1417
        %1511 = vmatprep.subr.bf16.mxu0 0
        %1512 = vmatpush1.bf16.msra.mxu0 %v1418
        %1513 = vmatprep.subr.bf16.mxu0 0
        %1514 = vmatpush1.bf16.msra.mxu0 %v1419
        %1515 = vmatprep.subr.bf16.mxu0 0
        %1516 = vmatpush1.bf16.msra.mxu0 %v1420
        %1517 = vmatprep.subr.bf16.mxu0 0
        %1518 = vmatpush1.bf16.msra.mxu0 %v1421
        %1519 = vmatprep.subr.bf16.mxu0 0
        %1520 = vmatpush1.bf16.msra.mxu0 %v1422
        %1521 = vmatprep.subr.bf16.mxu0 0
        %1522 = vmatpush1.bf16.msra.mxu0 %v1423
        %1523 = vmatprep.subr.bf16.mxu0 0
        %1524 = vmatpush1.bf16.msra.mxu0 %v1424
        %1525 = vmatprep.subr.bf16.mxu0 0
        %1526 = vmatpush1.bf16.msra.mxu0 %v1425
        %1527 = vmatprep.subr.bf16.mxu0 0
        %1528 = vmatpush1.bf16.msra.mxu0 %v1426
        %1529 = vmatprep.subr.bf16.mxu0 0
        %1530 = vmatpush1.bf16.msra.mxu0 %v1427
        %1531 = vmatprep.subr.bf16.mxu0 0
        %1532 = vmatpush1.bf16.msra.mxu0 %v1428
        %1533 = vmatprep.mubr.bf16.mxu0 %v1203
        %1534 = vmatmul.mubr.bf16.gmra.mrb[0].mxu0 %v1202
        %v1535 = vpop.f32.mrb[0].mxu0
        %v1536 = vadd.f32 %v1496, %v1535
        %v1537 = vpop.f32.mrb[0].mxu0
        %v1538 = vpop.f32.mrb[0].mxu0
        %v1539 = vpop.f32.mrb[0].mxu0
        %1540 = vdwg.mxu0
        %v1541 = vmax.f32 %v1536, 0.0
        %v1542 = vpack.c.bf16 %v1541, %v1541
        %v1543 = vld [vmem:[%s10] sm:$0xf]
        %v1544 = vld [vmem:[%s10 + $0x4] sm:$0xf]
        %v1545 = vld [vmem:[%s10 + $0x8] sm:$0xf]
        %v1546 = vld [vmem:[%s10 + $0xc] sm:$0xf]
        %v1547 = vld [vmem:[%s11] sm:$0x1]
        %v1552 = vunpack.c.l.b16 %v1543
        %v1553 = vunpack.c.l.b16 %v1544
        %v1554 = vunpack.c.l.b16 %v1545
        %v1555 = vunpack.c.l.b16 %v1546
        %v1556 = vpack.c.b16 %v1553, %v1552
        %v1557 = vpack.c.b16 %v1555, %v1554
        %vm1560 = vcmask 261120
        %v1562 = vsel %vm1560, %v1542, 0
        %1564 = vmatprep.subr.bf16.mxu0 0
        %1565 = vmatpush1.bf16.msra.mxu0 %v1556
        %1566 = vmatprep.subr.bf16.mxu0 0
        %1567 = vmatpush1.bf16.msra.mxu0 %v1557
        %1568 = vmatprep.subr.bf16.mxu0 0
        %1569 = vmatpush1.bf16.msra.mxu0 0
        %1570 = vmatprep.subr.bf16.mxu0 0
        %1571 = vmatpush1.bf16.msra.mxu0 0
        %1572 = vmatprep.subr.bf16.mxu0 0
        %1573 = vmatpush1.bf16.msra.mxu0 0
        %1574 = vmatprep.subr.bf16.mxu0 0
        %1575 = vmatpush1.bf16.msra.mxu0 0
        %1576 = vmatprep.subr.bf16.mxu0 0
        %1577 = vmatpush1.bf16.msra.mxu0 0
        %1578 = vmatprep.subr.bf16.mxu0 0
        %1579 = vmatpush1.bf16.msra.mxu0 0
        %1580 = vmatprep.subr.bf16.mxu0 0
        %1581 = vmatpush1.bf16.msra.mxu0 0
        %1582 = vmatprep.subr.bf16.mxu0 0
        %1583 = vmatpush1.bf16.msra.mxu0 0
        %1584 = vmatprep.subr.bf16.mxu0 0
        %1585 = vmatpush1.bf16.msra.mxu0 0
        %1586 = vmatprep.subr.bf16.mxu0 0
        %1587 = vmatpush1.bf16.msra.mxu0 0
        %1588 = vmatprep.subr.bf16.mxu0 0
        %1589 = vmatpush1.bf16.msra.mxu0 0
        %1590 = vmatprep.subr.bf16.mxu0 0
        %1591 = vmatpush1.bf16.msra.mxu0 0
        %1592 = vmatprep.subr.bf16.mxu0 0
        %1593 = vmatpush1.bf16.msra.mxu0 0
        %1594 = vmatprep.subr.bf16.mxu0 0
        %1595 = vmatpush1.bf16.msra.mxu0 0
        %1596 = vmatprep.mubr.bf16.mxu0 0
        %1597 = vmatmul.mubr.bf16.gmra.mrb[0].mxu0 %v1562
        %v1598 = vpop.f32.mrb[0].mxu0
        %v1599 = vadd.f32 %v1547, %v1598
        %v1600 = vpop.f32.mrb[0].mxu0
        %v1601 = vpop.f32.mrb[0].mxu0
        %v1602 = vpop.f32.mrb[0].mxu0
        %1603 = vdwg.mxu0
        %1604 = vst [vmem:[%s420] sm:$0x1] %v1599
        %s1605 = sand.u32 %s292, 1
        %s1606 = scalar_lea.sflag [#allocation7], %s1605
        %s1607 = sand.u32 %s292, 1
        %s1608 = scalar_lea.vmem [#allocation8], %s1607
        // Predicated region
        $region73: #{fused_cnn_forward.1} parent=67 // pred_check
          %p1609 = pneg %p302
        $region74: #{fused_cnn_forward.1} parent=67 // pred_check_branch
          %1611 = sbr.rel (%p1609) target = $region76
        $region75: #{fused_cnn_forward.1} parent=67 // pred_region
          %s1613 = ssub.s32 16, 16
          %1614 = vsyncadd %s1606, %s1613
          %s1615 = smul.addr %s27, 16
          %s1616 = scalar_lea.hbm %s12, %s1615
          %s1618 = sshll.u32 %s1608, 4
          %s1619 = int_to_ptr.vmem [resolvable:$true] %s1618
          %1621 = dma.vmem_to_hbm [thread:$0]  %s1619, 16, %s1616, %s1606
        $region76: #{fused_cnn_forward.1} parent=67 // pred_fallthru
          _
      $region68: #{fused_cnn_forward.1} parent=5 // pred_fallthru
        _
      %p1622 = scmp.le.s32.totalorder 2, %s22
      // Predicated region
      $region77: #{fused_cnn_forward.1} parent=5 // pred_check
        %p1623 = pneg %p1622
      $region78: #{fused_cnn_forward.1} parent=5 // pred_check_branch
        %1625 = sbr.rel (%p1623) target = $region80
      $region79: #{fused_cnn_forward.1} parent=5 // pred_region
        %s1626 = ssub.s32 %s22, 2
        // Predicated region
        $region81: #{fused_cnn_forward.1} parent=79 // pred_check
          %p1627 = pneg %p308
        $region82: #{fused_cnn_forward.1} parent=79 // pred_check_branch
          %1629 = sbr.rel (%p1627) target = $region84
        $region83: #{fused_cnn_forward.1} parent=79 // pred_region
          %s1630 = sand.u32 %s293, 1
          %s1631 = scalar_lea.sflag [#allocation7], %s1630
          %s1632 = sand.u32 %s293, 1
          %s1633 = scalar_lea.vmem [#allocation8], %s1632
          %1634 = dma.done %s1631, 16
        $region84: #{fused_cnn_forward.1} parent=79 // pred_fallthru
          _
      $region80: #{fused_cnn_forward.1} parent=5 // pred_fallthru
        _
    $region6: #{fused_cnn_forward.1} parent=1 // loop_footer
      %s26 = sadd.s32 1, %s22
    $region7: #{fused_cnn_forward.1} parent=1 // loop_footer_branch
      %21 = sbr.rel target = $region3
    $region8: #{fused_cnn_forward.1} parent=1 // loop_exit
      _
    %1635 = vsyncpa [#allocation6], 1
    %s1636 = scalar_lea.sflag [#allocation6], 1
    %1637 = vsyncpa %s1636, 1
    %1638 = vsyncpa [#allocation7], 1
    %s1639 = scalar_lea.sflag [#allocation7], 1
    %1640 = vsyncpa %s1639, 1

</llo_original>
